<compile_context>
chip_gen: v6e
topology: v6e:2x2x1
jax: 0.10.0
libtpu: 0.0.40
codegen_flags: <defaults>
</compile_context>

<pallas_src>
import jax
import jax.numpy as jnp
from jax.experimental import pallas as pl
from jax.experimental.pallas import tpu as pltpu

EMB_SIZE = 256
ACT_SIZE = 2
HIDDEN = 256
OUT_SIZE = 2
BR = 3          # branches: left, straight, right (matches torch.stack / command)
AUG_W = 8       # action (2) + command (1) + pad, packed into one float block


def _round_up(x, m):
    return ((x + m - 1) // m) * m


def actor_kernel(emb_ref, aug_ref,
                 w1e_ref, w2_ref, w3_ref, wo_ref,
                 small_ref, btail_ref,
                 out_ref):
    emb = emb_ref[...]                                   # (TB, 256)
    emb_bf = emb if emb.dtype == jnp.bfloat16 else emb.astype(jnp.bfloat16)

    aug = aug_ref[...]                                   # (TB, 8) f32
    act = aug[:, 0:ACT_SIZE]                             # (TB, 2)
    cmd = aug[:, ACT_SIZE:ACT_SIZE + 1]                  # (TB, 1) float command

    # Packed small params: rows of `small` are [w1a_row0, w1a_row1, b1, b2].
    w1a0 = small_ref[0:1, :]                             # (1, 256)
    w1a1 = small_ref[1:2, :]                             # (1, 256)
    b1 = small_ref[2:3, :]                               # (1, 256)
    b2 = small_ref[3:4, :]                               # (1, 256)
    b3 = btail_ref[:, 0:BR * HIDDEN]                     # (1, 768)  [b3l | b3s | b3r]
    bo = btail_ref[:, BR * HIDDEN:]                      # (1, 6)    [bol | bos | bor]

    # fc1 on cat(emb, action): emb part on the MXU, K=2 action part as two
    # VPU broadcast multiply-adds.
    h1 = jnp.dot(emb_bf, w1e_ref[...], preferred_element_type=jnp.float32)
    h1 = h1 + act[:, 0:1] * w1a0 + act[:, 1:2] * w1a1 + b1
    h1 = jnp.maximum(h1, 0.0)

    # fc2
    h2 = jnp.dot(h1.astype(jnp.bfloat16), w2_ref[...],
                 preferred_element_type=jnp.float32) + b2
    h2 = jnp.maximum(h2, 0.0)

    # Fused branch hidden layer: (TB, 768) = [h3_left | h3_straight | h3_right]
    h3 = jnp.dot(h2.astype(jnp.bfloat16), w3_ref[...],
                 preferred_element_type=jnp.float32) + b3
    h3 = jnp.maximum(h3, 0.0)

    # Block-diagonal output head: one MXU pass gives all three branch outputs
    # (TB, 6) = [y_left | y_straight | y_right]; per-row branch select is a
    # tiny where-chain on 6 lanes (== torch.stack + gather(command)).
    y_all = jnp.dot(h3.astype(jnp.bfloat16), wo_ref[...],
                    preferred_element_type=jnp.float32) + bo               # (TB, 6)

    y_sel = jnp.where(cmd == 0.0, y_all[:, 0:2],
                      jnp.where(cmd == 1.0, y_all[:, 2:4], y_all[:, 4:6]))  # (TB, 2)

    out_ref[...] = jnp.tanh(y_sel)


def init_params(key):
    """PyTorch-style uniform(-1/sqrt(fan_in), 1/sqrt(fan_in)) init.

    Weights stored as [in_features, out_features] (transpose of torch Linear.weight).
    """
    def linear(key, fan_in, fan_out):
        kw, kb = jax.random.split(key)
        bound = 1.0 / jnp.sqrt(jnp.float32(fan_in))
        w = jax.random.uniform(kw, (fan_in, fan_out), jnp.float32, -bound, bound)
        b = jax.random.uniform(kb, (1, fan_out), jnp.float32, -bound, bound)
        return w, b

    keys = jax.random.split(key, 8)
    w1, b1 = linear(keys[0], EMB_SIZE + ACT_SIZE, HIDDEN)
    w2, b2 = linear(keys[1], HIDDEN, HIDDEN)
    w3l, b3l = linear(keys[2], HIDDEN, HIDDEN)
    wol, bol = linear(keys[3], HIDDEN, OUT_SIZE)
    w3s, b3s = linear(keys[4], HIDDEN, HIDDEN)
    wos, bos = linear(keys[5], HIDDEN, OUT_SIZE)
    w3r, b3r = linear(keys[6], HIDDEN, HIDDEN)
    wor, bor = linear(keys[7], HIDDEN, OUT_SIZE)

    return dict(
        w1e=w1[:EMB_SIZE], w1a=w1[EMB_SIZE:], b1=b1,
        w2=w2, b2=b2,
        w3l=w3l, b3l=b3l, wol=wol, bol=bol,
        w3s=w3s, b3s=b3s, wos=wos, bos=bos,
        w3r=w3r, b3r=b3r, wor=wor, bor=bor,
    )


def pack_params(p):
    """Pack/fuse the per-layer params into the kernel's input layout."""
    bf16 = jnp.bfloat16
    w1e = p["w1e"].astype(bf16)                                               # (256, 256)
    w2 = p["w2"].astype(bf16)                                                 # (256, 256)
    # Branch order matches torch.stack((left, straight, right), 0) / command.
    w3 = jnp.concatenate([p["w3l"], p["w3s"], p["w3r"]], axis=1).astype(bf16)  # (256, 768)
    # Block-diagonal fused output head: (768, 6).
    wo = jnp.zeros((BR * HIDDEN, BR * OUT_SIZE), jnp.float32)
    wo = wo.at[0 * HIDDEN:1 * HIDDEN, 0:2].set(p["wol"])
    wo = wo.at[1 * HIDDEN:2 * HIDDEN, 2:4].set(p["wos"])
    wo = wo.at[2 * HIDDEN:3 * HIDDEN, 4:6].set(p["wor"])
    wo = wo.astype(bf16)
    small = jnp.concatenate([p["w1a"], p["b1"], p["b2"]], axis=0)             # (4, 256) f32
    btail = jnp.concatenate(
        [p["b3l"], p["b3s"], p["b3r"], p["bol"], p["bos"], p["bor"]], axis=1)  # (1, 774) f32
    return dict(w1e=w1e, w2=w2, w3=w3, wo=wo, small=small, btail=btail)


def actor_forward(emb, command, action, packed, *, tb=1024):
    """emb: (B, 256) f32 or bf16; command: (B, 1) int32 in {0,1,2}; action: (B, 2) f32."""
    B = emb.shape[0]
    tb = max(8, _round_up(tb, 8))
    TB = min(tb, _round_up(B, 8))
    # v7x megacore: when the batch can be split, cap the tile so the grid has
    # >= 2 steps and dimension_semantics=("parallel",) uses both TensorCores.
    if B > 8:
        TB = min(TB, _round_up(-(-B // 2), 8))
    Bp = _round_up(B, TB)

    # Fold command into the action block: (B, 8) = [a0, a1, cmd, 0, 0, 0, 0, 0].
    aug = jnp.zeros((B, AUG_W), jnp.float32)
    aug = aug.at[:, 0:ACT_SIZE].set(action.astype(jnp.float32))
    aug = aug.at[:, ACT_SIZE].set(command[:, 0].astype(jnp.float32))

    if Bp != B:
        pad = Bp - B
        emb = jnp.pad(emb, ((0, pad), (0, 0)))
        aug = jnp.pad(aug, ((0, pad), (0, 0)))   # padded rows: cmd=0, sliced off below

    grid = (Bp // TB,)

    inputs = (
        emb, aug,
        packed["w1e"], packed["w2"], packed["w3"], packed["wo"],
        packed["small"], packed["btail"],
    )

    in_specs = [
        pl.BlockSpec((TB, EMB_SIZE), lambda i: (i, 0)),                    # emb (tiled)
        pl.BlockSpec((TB, AUG_W), lambda i: (i, 0)),                       # action+cmd (tiled)
        pl.BlockSpec((EMB_SIZE, HIDDEN), lambda i: (0, 0)),                # w1e (resident)
        pl.BlockSpec((HIDDEN, HIDDEN), lambda i: (0, 0)),                  # w2
        pl.BlockSpec((HIDDEN, BR * HIDDEN), lambda i: (0, 0)),             # w3 fused
        pl.BlockSpec((BR * HIDDEN, BR * OUT_SIZE), lambda i: (0, 0)),      # wo block-diag
        pl.BlockSpec((4, HIDDEN), lambda i: (0, 0)),                       # packed small
        pl.BlockSpec((1, BR * HIDDEN + BR * OUT_SIZE), lambda i: (0, 0)),  # packed biases
    ]
    out_spec = pl.BlockSpec((TB, OUT_SIZE), lambda i: (i, 0))

    flops = 2 * Bp * (EMB_SIZE * HIDDEN                 # fc1 (emb part)
                      + HIDDEN * HIDDEN                 # fc2
                      + HIDDEN * BR * HIDDEN            # fused fc3
                      + BR * HIDDEN * BR * OUT_SIZE)    # block-diagonal output head
    transcendentals = Bp * OUT_SIZE
    bytes_accessed = int(sum(int(x.size) * x.dtype.itemsize for x in inputs)
                         + Bp * OUT_SIZE * 4)

    out = pl.pallas_call(
        actor_kernel,
        out_shape=jax.ShapeDtypeStruct((Bp, OUT_SIZE), jnp.float32),
        grid=grid,
        in_specs=in_specs,
        out_specs=out_spec,
        compiler_params=pltpu.CompilerParams(
            dimension_semantics=("parallel",),
            vmem_limit_bytes=32 * 1024 * 1024),
        cost_estimate=pl.CostEstimate(
            flops=flops,
            transcendentals=transcendentals,
            bytes_accessed=bytes_accessed),
    )(*inputs)

    return out[:B] if Bp != B else out


def actor_reference(emb, command, action, p):
    """Pure-JAX f32 reference mirroring the PyTorch forward."""
    x = jnp.concatenate([emb.astype(jnp.float32), action], axis=1)
    w1 = jnp.concatenate([p["w1e"], p["w1a"]], axis=0)
    x = jax.nn.relu(x @ w1 + p["b1"])
    x = jax.nn.relu(x @ p["w2"] + p["b2"])
    xl = jax.nn.relu(x @ p["w3l"] + p["b3l"]) @ p["wol"] + p["bol"]
    xs = jax.nn.relu(x @ p["w3s"] + p["b3s"]) @ p["wos"] + p["bos"]
    xr = jax.nn.relu(x @ p["w3r"] + p["b3r"]) @ p["wor"] + p["bor"]
    stacked = jnp.stack([xl, xs, xr], axis=0)                        # (3, B, 2)
    idx = command[:, 0]
    sel = jnp.take_along_axis(
        stacked, idx[None, :, None].repeat(OUT_SIZE, axis=2), axis=0)[0]
    return jnp.tanh(sel)


if __name__ == "__main__":
    key = jax.random.PRNGKey(0)
    k_emb, k_act, k_cmd, k_param = jax.random.split(key, 4)

    params = init_params(k_param)
    packed = pack_params(params)

    # 1) Small-shape check (single grid step).
    B = 2
    emb = jax.random.normal(k_emb, (B, EMB_SIZE), jnp.float32)
    action = jax.random.normal(k_act, (B, ACT_SIZE), jnp.float32)
    command = jax.random.randint(k_cmd, (B, 1), 0, 3, jnp.int32)

    out = jax.block_until_ready(actor_forward(emb, command, action, packed))
    ref = actor_reference(emb, command, action, params)
    assert out.shape == (B, OUT_SIZE)
    # bf16 MXU operands (f32 accumulation) => relaxed tolerance vs f32 reference.
    assert jnp.allclose(out, ref, rtol=2e-2, atol=2e-2), (out, ref)

    # 2) Multi-step grid + batch-padding path (B not a multiple of the tile).
    B2 = 13
    emb2 = jax.random.normal(jax.random.PRNGKey(1), (B2, EMB_SIZE), jnp.float32)
    action2 = jax.random.normal(jax.random.PRNGKey(2), (B2, ACT_SIZE), jnp.float32)
    command2 = jax.random.randint(jax.random.PRNGKey(3), (B2, 1), 0, 3, jnp.int32)

    out2 = jax.block_until_ready(actor_forward(emb2, command2, action2, packed, tb=8))
    ref2 = actor_reference(emb2, command2, action2, params)
    assert out2.shape == (B2, OUT_SIZE)
    assert jnp.allclose(out2, ref2, rtol=2e-2, atol=2e-2), (out2, ref2)

    # 3) Default-tile path with the megacore >=2-step split (and padding).
    B3 = 300
    emb3 = jax.random.normal(jax.random.PRNGKey(4), (B3, EMB_SIZE), jnp.float32)
    action3 = jax.random.normal(jax.random.PRNGKey(5), (B3, ACT_SIZE), jnp.float32)
    command3 = jax.random.randint(jax.random.PRNGKey(6), (B3, 1), 0, 3, jnp.int32)

    out3 = jax.block_until_ready(actor_forward(emb3, command3, action3, packed))
    ref3 = actor_reference(emb3, command3, action3, params)
    assert out3.shape == (B3, OUT_SIZE)
    assert jnp.allclose(out3, ref3, rtol=2e-2, atol=2e-2)

    print("KERNEL_OK")
</pallas_src>

<mosaic_0001>
module attributes {stable_mosaic.version = 11 : i64} {
  func.func @actor_kernel(%arg0: i32, %arg1: memref<8x256xf32, #tpu.memory_space<vmem>>, %arg2: memref<8x8xf32, #tpu.memory_space<vmem>>, %arg3: memref<256x256xbf16, #tpu.memory_space<vmem>>, %arg4: memref<256x256xbf16, #tpu.memory_space<vmem>>, %arg5: memref<256x768xbf16, #tpu.memory_space<vmem>>, %arg6: memref<768x6xbf16, #tpu.memory_space<vmem>>, %arg7: memref<4x256xf32, #tpu.memory_space<vmem>>, %arg8: memref<1x774xf32, #tpu.memory_space<vmem>>, %arg9: memref<8x2xf32, #tpu.memory_space<vmem>>) attributes {dimension_semantics = [#tpu.dimension_semantics<parallel>], iteration_bounds = array<i64: 1>, scalar_prefetch = 0 : i64, scratch_operands = 0 : i64, tpu.core_type = #tpu.core_type<tc>, window_params = [{transform_indices = @transform_0, window_bounds = array<i64: 8, 256>}, {transform_indices = @transform_1, window_bounds = array<i64: 8, 8>}, {pipeline_mode = #tpu.pipeline_mode<synchronous>, transform_indices = @transform_2, window_bounds = array<i64: 256, 256>}, {pipeline_mode = #tpu.pipeline_mode<synchronous>, transform_indices = @transform_3, window_bounds = array<i64: 256, 256>}, {pipeline_mode = #tpu.pipeline_mode<synchronous>, transform_indices = @transform_4, window_bounds = array<i64: 256, 768>}, {pipeline_mode = #tpu.pipeline_mode<synchronous>, transform_indices = @transform_5, window_bounds = array<i64: 768, 6>}, {pipeline_mode = #tpu.pipeline_mode<synchronous>, transform_indices = @transform_6, window_bounds = array<i64: 4, 256>}, {pipeline_mode = #tpu.pipeline_mode<synchronous>, transform_indices = @transform_7, window_bounds = array<i64: 1, 774>}, {transform_indices = @transform_8, window_bounds = array<i64: 8, 2>}]} {
    %c0 = arith.constant 0 : index
    %c0_0 = arith.constant 0 : index
    %0 = vector.load %arg1[%c0, %c0_0] : memref<8x256xf32, #tpu.memory_space<vmem>>, vector<8x256xf32>
    %1 = arith.truncf %0 : vector<8x256xf32> to vector<8x256xbf16>
    %c0_1 = arith.constant 0 : index
    %c0_2 = arith.constant 0 : index
    %2 = vector.load %arg2[%c0_1, %c0_2] : memref<8x8xf32, #tpu.memory_space<vmem>>, vector<8x8xf32>
    %3 = vector.extract_strided_slice %2 {offsets = [0, 0], sizes = [8, 2], strides = [1, 1]} : vector<8x8xf32> to vector<8x2xf32>
    %4 = vector.extract_strided_slice %2 {offsets = [0, 2], sizes = [8, 1], strides = [1, 1]} : vector<8x8xf32> to vector<8x1xf32>
    %c0_3 = arith.constant 0 : index
    %c0_4 = arith.constant 0 : index
    %5 = vector.load %arg7[%c0_3, %c0_4] : memref<4x256xf32, #tpu.memory_space<vmem>>, vector<1x256xf32>
    %c1 = arith.constant 1 : index
    %c0_5 = arith.constant 0 : index
    %6 = vector.load %arg7[%c1, %c0_5] : memref<4x256xf32, #tpu.memory_space<vmem>>, vector<1x256xf32>
    %c2 = arith.constant 2 : index
    %c0_6 = arith.constant 0 : index
    %7 = vector.load %arg7[%c2, %c0_6] : memref<4x256xf32, #tpu.memory_space<vmem>>, vector<1x256xf32>
    %c3 = arith.constant 3 : index
    %c0_7 = arith.constant 0 : index
    %8 = vector.load %arg7[%c3, %c0_7] : memref<4x256xf32, #tpu.memory_space<vmem>>, vector<1x256xf32>
    %c0_8 = arith.constant 0 : index
    %c0_9 = arith.constant 0 : index
    %9 = vector.load %arg8[%c0_8, %c0_9] : memref<1x774xf32, #tpu.memory_space<vmem>>, vector<1x768xf32>
    %c0_10 = arith.constant 0 : index
    %c768 = arith.constant 768 : index
    %10 = vector.load %arg8[%c0_10, %c768] : memref<1x774xf32, #tpu.memory_space<vmem>>, vector<1x6xf32>
    %c0_11 = arith.constant 0 : index
    %c0_12 = arith.constant 0 : index
    %11 = vector.load %arg3[%c0_11, %c0_12] : memref<256x256xbf16, #tpu.memory_space<vmem>>, vector<256x256xbf16>
    %cst = arith.constant dense<0.000000e+00> : vector<8x256xf32>
    %12 = tpu.matmul %1, %11, %cst {dimension_numbers = #tpu.dot_dimension_numbers<[1], [0], [0], [1], [0, 0, 1, 1], [], []>} : vector<8x256xbf16>, vector<256x256xbf16>, vector<8x256xf32> -> vector<8x256xf32>
    %13 = vector.extract_strided_slice %3 {offsets = [0, 0], sizes = [8, 1], strides = [1, 1]} : vector<8x2xf32> to vector<8x1xf32>
    %14 = vector.broadcast %13 : vector<8x1xf32> to vector<8x256xf32>
    %15 = vector.broadcast %5 : vector<1x256xf32> to vector<8x256xf32>
    %16 = arith.mulf %14, %15 : vector<8x256xf32>
    %17 = arith.addf %12, %16 : vector<8x256xf32>
    %18 = vector.extract_strided_slice %3 {offsets = [0, 1], sizes = [8, 1], strides = [1, 1]} : vector<8x2xf32> to vector<8x1xf32>
    %19 = vector.broadcast %18 : vector<8x1xf32> to vector<8x256xf32>
    %20 = vector.broadcast %6 : vector<1x256xf32> to vector<8x256xf32>
    %21 = arith.mulf %19, %20 : vector<8x256xf32>
    %22 = arith.addf %17, %21 : vector<8x256xf32>
    %23 = vector.broadcast %7 : vector<1x256xf32> to vector<8x256xf32>
    %24 = arith.addf %22, %23 : vector<8x256xf32>
    %cst_13 = arith.constant 0.000000e+00 : f32
    %25 = vector.broadcast %cst_13 : f32 to vector<8x256xf32>
    %26 = arith.maximumf %24, %25 : vector<8x256xf32>
    %27 = arith.truncf %26 : vector<8x256xf32> to vector<8x256xbf16>
    %c0_14 = arith.constant 0 : index
    %c0_15 = arith.constant 0 : index
    %28 = vector.load %arg4[%c0_14, %c0_15] : memref<256x256xbf16, #tpu.memory_space<vmem>>, vector<256x256xbf16>
    %cst_16 = arith.constant dense<0.000000e+00> : vector<8x256xf32>
    %29 = tpu.matmul %27, %28, %cst_16 {dimension_numbers = #tpu.dot_dimension_numbers<[1], [0], [0], [1], [0, 0, 1, 1], [], []>} : vector<8x256xbf16>, vector<256x256xbf16>, vector<8x256xf32> -> vector<8x256xf32>
    %30 = vector.broadcast %8 : vector<1x256xf32> to vector<8x256xf32>
    %31 = arith.addf %29, %30 : vector<8x256xf32>
    %cst_17 = arith.constant 0.000000e+00 : f32
    %32 = vector.broadcast %cst_17 : f32 to vector<8x256xf32>
    %33 = arith.maximumf %31, %32 : vector<8x256xf32>
    %34 = arith.truncf %33 : vector<8x256xf32> to vector<8x256xbf16>
    %c0_18 = arith.constant 0 : index
    %c0_19 = arith.constant 0 : index
    %35 = vector.load %arg5[%c0_18, %c0_19] : memref<256x768xbf16, #tpu.memory_space<vmem>>, vector<256x768xbf16>
    %cst_20 = arith.constant dense<0.000000e+00> : vector<8x768xf32>
    %36 = tpu.matmul %34, %35, %cst_20 {dimension_numbers = #tpu.dot_dimension_numbers<[1], [0], [0], [1], [0, 0, 1, 1], [], []>} : vector<8x256xbf16>, vector<256x768xbf16>, vector<8x768xf32> -> vector<8x768xf32>
    %37 = vector.broadcast %9 : vector<1x768xf32> to vector<8x768xf32>
    %38 = arith.addf %36, %37 : vector<8x768xf32>
    %cst_21 = arith.constant 0.000000e+00 : f32
    %39 = vector.broadcast %cst_21 : f32 to vector<8x768xf32>
    %40 = arith.maximumf %38, %39 : vector<8x768xf32>
    %41 = arith.truncf %40 : vector<8x768xf32> to vector<8x768xbf16>
    %c0_22 = arith.constant 0 : index
    %c0_23 = arith.constant 0 : index
    %42 = vector.load %arg6[%c0_22, %c0_23] : memref<768x6xbf16, #tpu.memory_space<vmem>>, vector<768x6xbf16>
    %cst_24 = arith.constant dense<0.000000e+00> : vector<8x6xf32>
    %43 = tpu.matmul %41, %42, %cst_24 {dimension_numbers = #tpu.dot_dimension_numbers<[1], [0], [0], [1], [0, 0, 1, 1], [], []>} : vector<8x768xbf16>, vector<768x6xbf16>, vector<8x6xf32> -> vector<8x6xf32>
    %44 = vector.broadcast %10 : vector<1x6xf32> to vector<8x6xf32>
    %45 = arith.addf %43, %44 : vector<8x6xf32>
    %cst_25 = arith.constant 0.000000e+00 : f32
    %46 = vector.broadcast %cst_25 : f32 to vector<8x1xf32>
    %47 = arith.cmpf oeq, %4, %46 : vector<8x1xf32>
    %48 = vector.extract_strided_slice %45 {offsets = [0, 0], sizes = [8, 2], strides = [1, 1]} : vector<8x6xf32> to vector<8x2xf32>
    %cst_26 = arith.constant 1.000000e+00 : f32
    %49 = vector.broadcast %cst_26 : f32 to vector<8x1xf32>
    %50 = arith.cmpf oeq, %4, %49 : vector<8x1xf32>
    %51 = vector.extract_strided_slice %45 {offsets = [0, 2], sizes = [8, 2], strides = [1, 1]} : vector<8x6xf32> to vector<8x2xf32>
    %52 = vector.extract_strided_slice %45 {offsets = [0, 4], sizes = [8, 2], strides = [1, 1]} : vector<8x6xf32> to vector<8x2xf32>
    %53 = vector.shape_cast %50 : vector<8x1xi1> to vector<8x1xi1>
    %54 = vector.broadcast %53 : vector<8x1xi1> to vector<8x2xi1>
    %55 = arith.select %54, %51, %52 : vector<8x2xi1>, vector<8x2xf32>
    %56 = vector.shape_cast %47 : vector<8x1xi1> to vector<8x1xi1>
    %57 = vector.broadcast %56 : vector<8x1xi1> to vector<8x2xi1>
    %58 = arith.select %57, %48, %55 : vector<8x2xi1>, vector<8x2xf32>
    %59 = math.tanh %58 : vector<8x2xf32>
    %c0_27 = arith.constant 0 : index
    %c0_28 = arith.constant 0 : index
    %60 = vector.load %arg9[%c0_27, %c0_28] : memref<8x2xf32, #tpu.memory_space<vmem>>, vector<8x2xf32>
    tpu.vector_store %arg9[%c0_27, %c0_28], %59 {strides = array<i32>} : memref<8x2xf32, #tpu.memory_space<vmem>>, vector<8x2xf32>,
    return
  }
  func.func @transform_0(%arg0: i32) -> (i32, i32) {
    %c0_i32 = arith.constant 0 : i32
    %c0_i32_0 = arith.constant 0 : i32
    return %arg0, %c0_i32 : i32, i32
  }
  func.func @transform_1(%arg0: i32) -> (i32, i32) {
    %c0_i32 = arith.constant 0 : i32
    %c0_i32_0 = arith.constant 0 : i32
    return %arg0, %c0_i32 : i32, i32
  }
  func.func @transform_2(%arg0: i32) -> (i32, i32) {
    %c0_i32 = arith.constant 0 : i32
    %c0_i32_0 = arith.constant 0 : i32
    %c0_i32_1 = arith.constant 0 : i32
    return %c0_i32, %c0_i32_0 : i32, i32
  }
  func.func @transform_3(%arg0: i32) -> (i32, i32) {
    %c0_i32 = arith.constant 0 : i32
    %c0_i32_0 = arith.constant 0 : i32
    %c0_i32_1 = arith.constant 0 : i32
    return %c0_i32, %c0_i32_0 : i32, i32
  }
  func.func @transform_4(%arg0: i32) -> (i32, i32) {
    %c0_i32 = arith.constant 0 : i32
    %c0_i32_0 = arith.constant 0 : i32
    %c0_i32_1 = arith.constant 0 : i32
    return %c0_i32, %c0_i32_0 : i32, i32
  }
  func.func @transform_5(%arg0: i32) -> (i32, i32) {
    %c0_i32 = arith.constant 0 : i32
    %c0_i32_0 = arith.constant 0 : i32
    %c0_i32_1 = arith.constant 0 : i32
    return %c0_i32, %c0_i32_0 : i32, i32
  }
  func.func @transform_6(%arg0: i32) -> (i32, i32) {
    %c0_i32 = arith.constant 0 : i32
    %c0_i32_0 = arith.constant 0 : i32
    %c0_i32_1 = arith.constant 0 : i32
    return %c0_i32, %c0_i32_0 : i32, i32
  }
  func.func @transform_7(%arg0: i32) -> (i32, i32) {
    %c0_i32 = arith.constant 0 : i32
    %c0_i32_0 = arith.constant 0 : i32
    %c0_i32_1 = arith.constant 0 : i32
    return %c0_i32, %c0_i32_0 : i32, i32
  }
  func.func @transform_8(%arg0: i32) -> (i32, i32) {
    %c0_i32 = arith.constant 0 : i32
    %c0_i32_0 = arith.constant 0 : i32
    return %arg0, %c0_i32 : i32, i32
  }
}

</mosaic_0001>

<llo_original>
// kernel: tpu_custom_call.1
$region0: #{tpu_custom_call.1}
  #allocation0 [shape = 'u32[]', space=smem, size = 0x4, offset = 0x4, fixed_abs, tag = 'smem constant byte address 0x4 - core index']
  #allocation1 [shape = 'u32[144,128]{1,0:T(1,128)}', space=vmem, size = 0x12000, scoped, tag = 'internal scratch']
  %s0 = inlined_call_operand.vmem [shape: f32[8,256], index: 0, kind: input, shape index: {}]
  %s1 = inlined_call_operand.vmem [shape: f32[8,8], index: 1, kind: input, shape index: {}]
  %s2 = inlined_call_operand.vmem [shape: bf16[256,256], index: 2, kind: input, shape index: {}]
  %s3 = inlined_call_operand.hbm [shape: bf16[256,256], index: 3, kind: input, shape index: {}]
  %s4 = inlined_call_operand.hbm [shape: bf16[256,768], index: 4, kind: input, shape index: {}]
  %s5 = inlined_call_operand.vmem [shape: bf16[768,6], index: 5, kind: input, shape index: {}]
  %s6 = inlined_call_operand.vmem [shape: f32[4,256], index: 6, kind: input, shape index: {}]
  %s7 = inlined_call_operand.vmem [shape: f32[1,774], index: 7, kind: input, shape index: {}]
  %s8 = inlined_call_operand.vmem [shape: f32[8,2], index: 8, kind: output, shape index: {}]
  %s9 = sld [smem:[#allocation0]]
  $region50: #{tpu_custom_call.1} parent=0
    _
  %s11 = ssub.s32 1, %s9
  %s12 = scalar_select 0, %s11, %s9
  $region1: #{tpu_custom_call.1} parent=0
    #allocation2 [shape = 'u8[131072]{0}', space=vmem, size = 0x20000, scoped, tag = 'input window, operand 3, single buffered']
    #allocation3 [shape = 's32[1]{0}', space=sflag, size = 0x4, scoped, tag = 'scoped memory for tpu_custom_call.1']
    #allocation4 [shape = 'u8[393216]{0}', space=vmem, size = 0x60000, scoped, tag = 'input window, operand 4, single buffered']
    #allocation5 [shape = 's32[1]{0}', space=sflag, size = 0x4, scoped, tag = 'scoped memory for tpu_custom_call.1']
    %13 = vsyncpa [#allocation3], 0
    %14 = vsyncpa [#allocation5], 0
    // Predicated region
    $region2: #{tpu_custom_call.1} parent=1 // pred_check
      _
    $region3: #{tpu_custom_call.1} parent=1 // pred_check_branch
      %16 = sbr.rel (0) target = $region5
    $region4: #{tpu_custom_call.1} parent=1 // pred_region
      _
    $region5: #{tpu_custom_call.1} parent=1 // pred_fallthru
      _
    // Predicated region
    $region6: #{tpu_custom_call.1} parent=1 // pred_check
      _
    $region7: #{tpu_custom_call.1} parent=1 // pred_check_branch
      %18 = sbr.rel (0) target = $region9
    $region8: #{tpu_custom_call.1} parent=1 // pred_region
      _
    $region9: #{tpu_custom_call.1} parent=1 // pred_fallthru
      _
    // Predicated region
    $region10: #{tpu_custom_call.1} parent=1 // pred_check
      _
    $region11: #{tpu_custom_call.1} parent=1 // pred_check_branch
      %20 = sbr.rel (0) target = $region13
    $region12: #{tpu_custom_call.1} parent=1 // pred_region
      _
    $region13: #{tpu_custom_call.1} parent=1 // pred_fallthru
      _
    // Predicated region
    $region14: #{tpu_custom_call.1} parent=1 // pred_check
      _
    $region15: #{tpu_custom_call.1} parent=1 // pred_check_branch
      %22 = sbr.rel (0) target = $region17
    $region16: #{tpu_custom_call.1} parent=1 // pred_region
      %s24 = ssub.s32 4096, 4096
      %25 = vsyncadd [#allocation3], %s24
      %s26 = sshll.u32 [#allocation2], 4
      %s27 = int_to_ptr.vmem [resolvable:$true] %s26
      %32 = dma.hbm_to_vmem [thread:$0]  %s3, 4096, %s27, [#allocation3], 128, 128, 8
    $region17: #{tpu_custom_call.1} parent=1 // pred_fallthru
      _
    // Predicated region
    $region18: #{tpu_custom_call.1} parent=1 // pred_check
      _
    $region19: #{tpu_custom_call.1} parent=1 // pred_check_branch
      %34 = sbr.rel (0) target = $region21
    $region20: #{tpu_custom_call.1} parent=1 // pred_region
      %s36 = ssub.s32 12288, 12288
      %37 = vsyncadd [#allocation5], %s36
      %s38 = sshll.u32 [#allocation4], 4
      %s39 = int_to_ptr.vmem [resolvable:$true] %s38
      %44 = dma.hbm_to_vmem [thread:$0]  %s4, 12288, %s39, [#allocation5], 384, 384, 24
    $region21: #{tpu_custom_call.1} parent=1 // pred_fallthru
      _
    // Predicated region
    $region22: #{tpu_custom_call.1} parent=1 // pred_check
      _
    $region23: #{tpu_custom_call.1} parent=1 // pred_check_branch
      %46 = sbr.rel (0) target = $region25
    $region24: #{tpu_custom_call.1} parent=1 // pred_region
      _
    $region25: #{tpu_custom_call.1} parent=1 // pred_fallthru
      _
    // Predicated region
    $region26: #{tpu_custom_call.1} parent=1 // pred_check
      _
    $region27: #{tpu_custom_call.1} parent=1 // pred_check_branch
      %48 = sbr.rel (0) target = $region29
    $region28: #{tpu_custom_call.1} parent=1 // pred_region
      _
    $region29: #{tpu_custom_call.1} parent=1 // pred_fallthru
      _
    // Predicated region
    $region30: #{tpu_custom_call.1} parent=1 // pred_check
      _
    $region31: #{tpu_custom_call.1} parent=1 // pred_check_branch
      %50 = sbr.rel (0) target = $region33
    $region32: #{tpu_custom_call.1} parent=1 // pred_region
      _
    $region33: #{tpu_custom_call.1} parent=1 // pred_fallthru
      _
    // Predicated region
    $region34: #{tpu_custom_call.1} parent=1 // pred_check
      _
    $region35: #{tpu_custom_call.1} parent=1 // pred_check_branch
      %52 = sbr.rel (0) target = $region37
    $region36: #{tpu_custom_call.1} parent=1 // pred_region
      %53 = dma.done [#allocation3], 4096
    $region37: #{tpu_custom_call.1} parent=1 // pred_fallthru
      _
    // Predicated region
    $region38: #{tpu_custom_call.1} parent=1 // pred_check
      _
    $region39: #{tpu_custom_call.1} parent=1 // pred_check_branch
      %55 = sbr.rel (0) target = $region41
    $region40: #{tpu_custom_call.1} parent=1 // pred_region
      %56 = dma.done [#allocation5], 12288
    $region41: #{tpu_custom_call.1} parent=1 // pred_fallthru
      _
    %v58 = vld [vmem:[%s0] sm:$0xff]
    %v59 = vld [vmem:[%s0 + $0x8] sm:$0xff]
    %v60 = vpack.c.bf16 %v58, %v58
    %v61 = vpack.c.bf16 %v59, %v59
    %v62 = vld [vmem:[%s1] sm:$0xff]
    %v63 = vld [vmem:[%s6] ss:$4 sm:$0x3]
    %s64 = scalar_lea.vmem %s6, 1
    %v65 = vld [vmem:[%s64] ss:$4 sm:$0x3]
    %s66 = scalar_lea.vmem %s6, 2
    %v67 = vld [vmem:[%s66] ss:$4 sm:$0x3]
    %s68 = scalar_lea.vmem %s6, 3
    %v69 = vld [vmem:[%s68] ss:$4 sm:$0x3]
    %v70 = vld [vmem:[%s7] sm:$0x3f]
    %v71 = vld [vmem:[%s7 + $0x6] sm:$0x1]
    %v72 = vld [vmem:[%s2] sm:$0xff]
    %v73 = vld [vmem:[%s2 + $0x8] sm:$0xff]
    %v74 = vld [vmem:[%s2 + $0x10] sm:$0xff]
    %v75 = vld [vmem:[%s2 + $0x18] sm:$0xff]
    %v76 = vld [vmem:[%s2 + $0x20] sm:$0xff]
    %v77 = vld [vmem:[%s2 + $0x28] sm:$0xff]
    %v78 = vld [vmem:[%s2 + $0x30] sm:$0xff]
    %v79 = vld [vmem:[%s2 + $0x38] sm:$0xff]
    %v80 = vld [vmem:[%s2 + $0x40] sm:$0xff]
    %v81 = vld [vmem:[%s2 + $0x48] sm:$0xff]
    %v82 = vld [vmem:[%s2 + $0x50] sm:$0xff]
    %v83 = vld [vmem:[%s2 + $0x58] sm:$0xff]
    %v84 = vld [vmem:[%s2 + $0x60] sm:$0xff]
    %v85 = vld [vmem:[%s2 + $0x68] sm:$0xff]
    %v86 = vld [vmem:[%s2 + $0x70] sm:$0xff]
    %v87 = vld [vmem:[%s2 + $0x78] sm:$0xff]
    %v88 = vld [vmem:[%s2 + $0x80] sm:$0xff]
    %v89 = vld [vmem:[%s2 + $0x88] sm:$0xff]
    %v90 = vld [vmem:[%s2 + $0x90] sm:$0xff]
    %v91 = vld [vmem:[%s2 + $0x98] sm:$0xff]
    %v92 = vld [vmem:[%s2 + $0xa0] sm:$0xff]
    %v93 = vld [vmem:[%s2 + $0xa8] sm:$0xff]
    %v94 = vld [vmem:[%s2 + $0xb0] sm:$0xff]
    %v95 = vld [vmem:[%s2 + $0xb8] sm:$0xff]
    %v96 = vld [vmem:[%s2 + $0xc0] sm:$0xff]
    %v97 = vld [vmem:[%s2 + $0xc8] sm:$0xff]
    %v98 = vld [vmem:[%s2 + $0xd0] sm:$0xff]
    %v99 = vld [vmem:[%s2 + $0xd8] sm:$0xff]
    %v100 = vld [vmem:[%s2 + $0xe0] sm:$0xff]
    %v101 = vld [vmem:[%s2 + $0xe8] sm:$0xff]
    %v102 = vld [vmem:[%s2 + $0xf0] sm:$0xff]
    %v103 = vld [vmem:[%s2 + $0xf8] sm:$0xff]
    %105 = vset.pattern.permute.xlu0 0
    %106 = vperm.xlu0 %105, %v62
    %v107 = vpop.permute.xlu0 %106
    %v110 = vlaneseq
    %v111 = vshrl.u32 %v110, 7
    %v112 = vsub.s32 0, %v111
    %v113 = vrot.slane %v63, %v112
    %v114 = vlaneseq
    %v115 = vshrl.u32 %v114, 7
    %v116 = vsub.s32 1, %v115
    %v117 = vrot.slane %v63, %v116
    %v120 = vmul.f32 %v107, %v113
    %v121 = vmul.f32 %v107, %v117
    %v154 = vunpack.c.l.b16 %v72
    %v155 = vunpack.c.h.b16 %v72
    %v156 = vunpack.c.l.b16 %v73
    %v157 = vunpack.c.h.b16 %v73
    %v158 = vunpack.c.l.b16 %v74
    %v159 = vunpack.c.h.b16 %v74
    %v160 = vunpack.c.l.b16 %v75
    %v161 = vunpack.c.h.b16 %v75
    %v162 = vunpack.c.l.b16 %v76
    %v163 = vunpack.c.h.b16 %v76
    %v164 = vunpack.c.l.b16 %v77
    %v165 = vunpack.c.h.b16 %v77
    %v166 = vunpack.c.l.b16 %v78
    %v167 = vunpack.c.h.b16 %v78
    %v168 = vunpack.c.l.b16 %v79
    %v169 = vunpack.c.h.b16 %v79
    %v170 = vunpack.c.l.b16 %v80
    %v171 = vunpack.c.h.b16 %v80
    %v172 = vunpack.c.l.b16 %v81
    %v173 = vunpack.c.h.b16 %v81
    %v174 = vunpack.c.l.b16 %v82
    %v175 = vunpack.c.h.b16 %v82
    %v176 = vunpack.c.l.b16 %v83
    %v177 = vunpack.c.h.b16 %v83
    %v178 = vunpack.c.l.b16 %v84
    %v179 = vunpack.c.h.b16 %v84
    %v180 = vunpack.c.l.b16 %v85
    %v181 = vunpack.c.h.b16 %v85
    %v182 = vunpack.c.l.b16 %v86
    %v183 = vunpack.c.h.b16 %v86
    %v184 = vunpack.c.l.b16 %v87
    %v185 = vunpack.c.h.b16 %v87
    %v186 = vunpack.c.l.b16 %v88
    %v187 = vunpack.c.h.b16 %v88
    %v188 = vunpack.c.l.b16 %v89
    %v189 = vunpack.c.h.b16 %v89
    %v190 = vunpack.c.l.b16 %v90
    %v191 = vunpack.c.h.b16 %v90
    %v192 = vunpack.c.l.b16 %v91
    %v193 = vunpack.c.h.b16 %v91
    %v194 = vunpack.c.l.b16 %v92
    %v195 = vunpack.c.h.b16 %v92
    %v196 = vunpack.c.l.b16 %v93
    %v197 = vunpack.c.h.b16 %v93
    %v198 = vunpack.c.l.b16 %v94
    %v199 = vunpack.c.h.b16 %v94
    %v200 = vunpack.c.l.b16 %v95
    %v201 = vunpack.c.h.b16 %v95
    %v202 = vunpack.c.l.b16 %v96
    %v203 = vunpack.c.h.b16 %v96
    %v204 = vunpack.c.l.b16 %v97
    %v205 = vunpack.c.h.b16 %v97
    %v206 = vunpack.c.l.b16 %v98
    %v207 = vunpack.c.h.b16 %v98
    %v208 = vunpack.c.l.b16 %v99
    %v209 = vunpack.c.h.b16 %v99
    %v210 = vunpack.c.l.b16 %v100
    %v211 = vunpack.c.h.b16 %v100
    %v212 = vunpack.c.l.b16 %v101
    %v213 = vunpack.c.h.b16 %v101
    %v214 = vunpack.c.l.b16 %v102
    %v215 = vunpack.c.h.b16 %v102
    %v216 = vunpack.c.l.b16 %v103
    %v217 = vunpack.c.h.b16 %v103
    %v218 = vpack.c.b16 %v156, %v154
    %v219 = vpack.c.b16 %v157, %v155
    %v220 = vpack.c.b16 %v160, %v158
    %v221 = vpack.c.b16 %v161, %v159
    %v222 = vpack.c.b16 %v164, %v162
    %v223 = vpack.c.b16 %v165, %v163
    %v224 = vpack.c.b16 %v168, %v166
    %v225 = vpack.c.b16 %v169, %v167
    %v226 = vpack.c.b16 %v172, %v170
    %v227 = vpack.c.b16 %v173, %v171
    %v228 = vpack.c.b16 %v176, %v174
    %v229 = vpack.c.b16 %v177, %v175
    %v230 = vpack.c.b16 %v180, %v178
    %v231 = vpack.c.b16 %v181, %v179
    %v232 = vpack.c.b16 %v184, %v182
    %v233 = vpack.c.b16 %v185, %v183
    %v234 = vpack.c.b16 %v188, %v186
    %v235 = vpack.c.b16 %v189, %v187
    %v236 = vpack.c.b16 %v192, %v190
    %v237 = vpack.c.b16 %v193, %v191
    %v238 = vpack.c.b16 %v196, %v194
    %v239 = vpack.c.b16 %v197, %v195
    %v240 = vpack.c.b16 %v200, %v198
    %v241 = vpack.c.b16 %v201, %v199
    %v242 = vpack.c.b16 %v204, %v202
    %v243 = vpack.c.b16 %v205, %v203
    %v244 = vpack.c.b16 %v208, %v206
    %v245 = vpack.c.b16 %v209, %v207
    %v246 = vpack.c.b16 %v212, %v210
    %v247 = vpack.c.b16 %v213, %v211
    %v248 = vpack.c.b16 %v216, %v214
    %v249 = vpack.c.b16 %v217, %v215
    %282 = vmatprep.subr.bf16.mxu0 %v233
    %283 = vmatpush1.bf16.msra.mxu0 %v232
    %284 = vmatprep.subr.bf16.mxu0 %v231
    %285 = vmatpush1.bf16.msra.mxu0 %v230
    %286 = vmatprep.subr.bf16.mxu0 %v229
    %287 = vmatpush1.bf16.msra.mxu0 %v228
    %288 = vmatprep.subr.bf16.mxu0 %v227
    %289 = vmatpush1.bf16.msra.mxu0 %v226
    %290 = vmatprep.subr.bf16.mxu0 %v225
    %291 = vmatpush1.bf16.msra.mxu0 %v224
    %292 = vmatprep.subr.bf16.mxu0 %v223
    %293 = vmatpush1.bf16.msra.mxu0 %v222
    %294 = vmatprep.subr.bf16.mxu0 %v221
    %295 = vmatpush1.bf16.msra.mxu0 %v220
    %296 = vmatprep.subr.bf16.mxu0 %v219
    %297 = vmatpush1.bf16.msra.mxu0 %v218
    %298 = vmatprep.subr.bf16.mxu0 %v249
    %299 = vmatpush2.bf16.msra.mxu0 %v248
    %300 = vmatprep.subr.bf16.mxu0 %v247
    %301 = vmatpush2.bf16.msra.mxu0 %v246
    %302 = vmatprep.subr.bf16.mxu0 %v245
    %303 = vmatpush2.bf16.msra.mxu0 %v244
    %304 = vmatprep.subr.bf16.mxu0 %v243
    %305 = vmatpush2.bf16.msra.mxu0 %v242
    %306 = vmatprep.subr.bf16.mxu0 %v241
    %307 = vmatpush2.bf16.msra.mxu0 %v240
    %308 = vmatprep.subr.bf16.mxu0 %v239
    %309 = vmatpush2.bf16.msra.mxu0 %v238
    %310 = vmatprep.subr.bf16.mxu0 %v237
    %311 = vmatpush2.bf16.msra.mxu0 %v236
    %312 = vmatprep.subr.bf16.mxu0 %v235
    %313 = vmatpush2.bf16.msra.mxu0 %v234
    %314 = vmatprep.mubr.bf16.mxu0 %v61
    %315 = vmatmul.mubr.bf16.gmra.mxu0 %v60
    %v316 = vpop.f32.mrf.mxu0
    %v317 = vadd.f32 %v120, %v316
    %v318 = vpop.f32.mrf.mxu0
    %v319 = vadd.f32 %v121, %v318
    %v320 = vpop.f32.mrf.mxu0
    %v321 = vpop.f32.mrf.mxu0
    %322 = vdwg.mxu0
    %323 = vset.pattern.permute.xlu0 1
    %324 = vperm.xlu0 %323, %v62
    %v325 = vpop.permute.xlu0 %324
    %v328 = vlaneseq
    %v329 = vshrl.u32 %v328, 7
    %v330 = vsub.s32 0, %v329
    %v331 = vrot.slane %v65, %v330
    %v332 = vlaneseq
    %v333 = vshrl.u32 %v332, 7
    %v334 = vsub.s32 1, %v333
    %v335 = vrot.slane %v65, %v334
    %v338 = vmul.f32 %v325, %v331
    %v339 = vmul.f32 %v325, %v335
    %v340 = vadd.f32 %v317, %v338
    %v341 = vadd.f32 %v319, %v339
    %v343 = vlaneseq
    %v344 = vshrl.u32 %v343, 7
    %v345 = vsub.s32 0, %v344
    %v346 = vrot.slane %v67, %v345
    %v347 = vlaneseq
    %v348 = vshrl.u32 %v347, 7
    %v349 = vsub.s32 1, %v348
    %v350 = vrot.slane %v67, %v349
    %v353 = vadd.f32 %v340, %v346
    %v354 = vadd.f32 %v341, %v350
    %v355 = vmax.f32 %v353, 0.0
    %v356 = vmax.f32 %v354, 0.0
    %v357 = vpack.c.bf16 %v355, %v355
    %v358 = vpack.c.bf16 %v356, %v356
    %v359 = vld [vmem:[#allocation2] sm:$0xff]
    %v360 = vld [vmem:[#allocation2 + $0x8] sm:$0xff]
    %v361 = vld [vmem:[#allocation2 + $0x10] sm:$0xff]
    %v362 = vld [vmem:[#allocation2 + $0x18] sm:$0xff]
    %v363 = vld [vmem:[#allocation2 + $0x20] sm:$0xff]
    %v364 = vld [vmem:[#allocation2 + $0x28] sm:$0xff]
    %v365 = vld [vmem:[#allocation2 + $0x30] sm:$0xff]
    %v366 = vld [vmem:[#allocation2 + $0x38] sm:$0xff]
    %v367 = vld [vmem:[#allocation2 + $0x40] sm:$0xff]
    %v368 = vld [vmem:[#allocation2 + $0x48] sm:$0xff]
    %v369 = vld [vmem:[#allocation2 + $0x50] sm:$0xff]
    %v370 = vld [vmem:[#allocation2 + $0x58] sm:$0xff]
    %v371 = vld [vmem:[#allocation2 + $0x60] sm:$0xff]
    %v372 = vld [vmem:[#allocation2 + $0x68] sm:$0xff]
    %v373 = vld [vmem:[#allocation2 + $0x70] sm:$0xff]
    %v374 = vld [vmem:[#allocation2 + $0x78] sm:$0xff]
    %v375 = vld [vmem:[#allocation2 + $0x80] sm:$0xff]
    %v376 = vld [vmem:[#allocation2 + $0x88] sm:$0xff]
    %v377 = vld [vmem:[#allocation2 + $0x90] sm:$0xff]
    %v378 = vld [vmem:[#allocation2 + $0x98] sm:$0xff]
    %v379 = vld [vmem:[#allocation2 + $0xa0] sm:$0xff]
    %v380 = vld [vmem:[#allocation2 + $0xa8] sm:$0xff]
    %v381 = vld [vmem:[#allocation2 + $0xb0] sm:$0xff]
    %v382 = vld [vmem:[#allocation2 + $0xb8] sm:$0xff]
    %v383 = vld [vmem:[#allocation2 + $0xc0] sm:$0xff]
    %v384 = vld [vmem:[#allocation2 + $0xc8] sm:$0xff]
    %v385 = vld [vmem:[#allocation2 + $0xd0] sm:$0xff]
    %v386 = vld [vmem:[#allocation2 + $0xd8] sm:$0xff]
    %v387 = vld [vmem:[#allocation2 + $0xe0] sm:$0xff]
    %v388 = vld [vmem:[#allocation2 + $0xe8] sm:$0xff]
    %v389 = vld [vmem:[#allocation2 + $0xf0] sm:$0xff]
    %v390 = vld [vmem:[#allocation2 + $0xf8] sm:$0xff]
    %v392 = vlaneseq
    %v393 = vshrl.u32 %v392, 7
    %v394 = vsub.s32 0, %v393
    %v395 = vrot.slane %v69, %v394
    %v396 = vlaneseq
    %v397 = vshrl.u32 %v396, 7
    %v398 = vsub.s32 1, %v397
    %v399 = vrot.slane %v69, %v398
    %v434 = vunpack.c.l.b16 %v359
    %v435 = vunpack.c.h.b16 %v359
    %v436 = vunpack.c.l.b16 %v360
    %v437 = vunpack.c.h.b16 %v360
    %v438 = vunpack.c.l.b16 %v361
    %v439 = vunpack.c.h.b16 %v361
    %v440 = vunpack.c.l.b16 %v362
    %v441 = vunpack.c.h.b16 %v362
    %v442 = vunpack.c.l.b16 %v363
    %v443 = vunpack.c.h.b16 %v363
    %v444 = vunpack.c.l.b16 %v364
    %v445 = vunpack.c.h.b16 %v364
    %v446 = vunpack.c.l.b16 %v365
    %v447 = vunpack.c.h.b16 %v365
    %v448 = vunpack.c.l.b16 %v366
    %v449 = vunpack.c.h.b16 %v366
    %v450 = vunpack.c.l.b16 %v367
    %v451 = vunpack.c.h.b16 %v367
    %v452 = vunpack.c.l.b16 %v368
    %v453 = vunpack.c.h.b16 %v368
    %v454 = vunpack.c.l.b16 %v369
    %v455 = vunpack.c.h.b16 %v369
    %v456 = vunpack.c.l.b16 %v370
    %v457 = vunpack.c.h.b16 %v370
    %v458 = vunpack.c.l.b16 %v371
    %v459 = vunpack.c.h.b16 %v371
    %v460 = vunpack.c.l.b16 %v372
    %v461 = vunpack.c.h.b16 %v372
    %v462 = vunpack.c.l.b16 %v373
    %v463 = vunpack.c.h.b16 %v373
    %v464 = vunpack.c.l.b16 %v374
    %v465 = vunpack.c.h.b16 %v374
    %v466 = vunpack.c.l.b16 %v375
    %v467 = vunpack.c.h.b16 %v375
    %v468 = vunpack.c.l.b16 %v376
    %v469 = vunpack.c.h.b16 %v376
    %v470 = vunpack.c.l.b16 %v377
    %v471 = vunpack.c.h.b16 %v377
    %v472 = vunpack.c.l.b16 %v378
    %v473 = vunpack.c.h.b16 %v378
    %v474 = vunpack.c.l.b16 %v379
    %v475 = vunpack.c.h.b16 %v379
    %v476 = vunpack.c.l.b16 %v380
    %v477 = vunpack.c.h.b16 %v380
    %v478 = vunpack.c.l.b16 %v381
    %v479 = vunpack.c.h.b16 %v381
    %v480 = vunpack.c.l.b16 %v382
    %v481 = vunpack.c.h.b16 %v382
    %v482 = vunpack.c.l.b16 %v383
    %v483 = vunpack.c.h.b16 %v383
    %v484 = vunpack.c.l.b16 %v384
    %v485 = vunpack.c.h.b16 %v384
    %v486 = vunpack.c.l.b16 %v385
    %v487 = vunpack.c.h.b16 %v385
    %v488 = vunpack.c.l.b16 %v386
    %v489 = vunpack.c.h.b16 %v386
    %v490 = vunpack.c.l.b16 %v387
    %v491 = vunpack.c.h.b16 %v387
    %v492 = vunpack.c.l.b16 %v388
    %v493 = vunpack.c.h.b16 %v388
    %v494 = vunpack.c.l.b16 %v389
    %v495 = vunpack.c.h.b16 %v389
    %v496 = vunpack.c.l.b16 %v390
    %v497 = vunpack.c.h.b16 %v390
    %v498 = vpack.c.b16 %v436, %v434
    %v499 = vpack.c.b16 %v437, %v435
    %v500 = vpack.c.b16 %v440, %v438
    %v501 = vpack.c.b16 %v441, %v439
    %v502 = vpack.c.b16 %v444, %v442
    %v503 = vpack.c.b16 %v445, %v443
    %v504 = vpack.c.b16 %v448, %v446
    %v505 = vpack.c.b16 %v449, %v447
    %v506 = vpack.c.b16 %v452, %v450
    %v507 = vpack.c.b16 %v453, %v451
    %v508 = vpack.c.b16 %v456, %v454
    %v509 = vpack.c.b16 %v457, %v455
    %v510 = vpack.c.b16 %v460, %v458
    %v511 = vpack.c.b16 %v461, %v459
    %v512 = vpack.c.b16 %v464, %v462
    %v513 = vpack.c.b16 %v465, %v463
    %v514 = vpack.c.b16 %v468, %v466
    %v515 = vpack.c.b16 %v469, %v467
    %v516 = vpack.c.b16 %v472, %v470
    %v517 = vpack.c.b16 %v473, %v471
    %v518 = vpack.c.b16 %v476, %v474
    %v519 = vpack.c.b16 %v477, %v475
    %v520 = vpack.c.b16 %v480, %v478
    %v521 = vpack.c.b16 %v481, %v479
    %v522 = vpack.c.b16 %v484, %v482
    %v523 = vpack.c.b16 %v485, %v483
    %v524 = vpack.c.b16 %v488, %v486
    %v525 = vpack.c.b16 %v489, %v487
    %v526 = vpack.c.b16 %v492, %v490
    %v527 = vpack.c.b16 %v493, %v491
    %v528 = vpack.c.b16 %v496, %v494
    %v529 = vpack.c.b16 %v497, %v495
    %562 = vmatprep.subr.bf16.mxu0 %v513
    %563 = vmatpush1.bf16.msra.mxu0 %v512
    %564 = vmatprep.subr.bf16.mxu0 %v511
    %565 = vmatpush1.bf16.msra.mxu0 %v510
    %566 = vmatprep.subr.bf16.mxu0 %v509
    %567 = vmatpush1.bf16.msra.mxu0 %v508
    %568 = vmatprep.subr.bf16.mxu0 %v507
    %569 = vmatpush1.bf16.msra.mxu0 %v506
    %570 = vmatprep.subr.bf16.mxu0 %v505
    %571 = vmatpush1.bf16.msra.mxu0 %v504
    %572 = vmatprep.subr.bf16.mxu0 %v503
    %573 = vmatpush1.bf16.msra.mxu0 %v502
    %574 = vmatprep.subr.bf16.mxu0 %v501
    %575 = vmatpush1.bf16.msra.mxu0 %v500
    %576 = vmatprep.subr.bf16.mxu0 %v499
    %577 = vmatpush1.bf16.msra.mxu0 %v498
    %578 = vmatprep.subr.bf16.mxu0 %v529
    %579 = vmatpush2.bf16.msra.mxu0 %v528
    %580 = vmatprep.subr.bf16.mxu0 %v527
    %581 = vmatpush2.bf16.msra.mxu0 %v526
    %582 = vmatprep.subr.bf16.mxu0 %v525
    %583 = vmatpush2.bf16.msra.mxu0 %v524
    %584 = vmatprep.subr.bf16.mxu0 %v523
    %585 = vmatpush2.bf16.msra.mxu0 %v522
    %586 = vmatprep.subr.bf16.mxu0 %v521
    %587 = vmatpush2.bf16.msra.mxu0 %v520
    %588 = vmatprep.subr.bf16.mxu0 %v519
    %589 = vmatpush2.bf16.msra.mxu0 %v518
    %590 = vmatprep.subr.bf16.mxu0 %v517
    %591 = vmatpush2.bf16.msra.mxu0 %v516
    %592 = vmatprep.subr.bf16.mxu0 %v515
    %593 = vmatpush2.bf16.msra.mxu0 %v514
    %594 = vmatprep.mubr.bf16.mxu0 %v358
    %595 = vmatmul.mubr.bf16.gmra.mxu0 %v357
    %v596 = vpop.f32.mrf.mxu0
    %v597 = vadd.f32 %v395, %v596
    %v598 = vpop.f32.mrf.mxu0
    %v599 = vadd.f32 %v399, %v598
    %v600 = vpop.f32.mrf.mxu0
    %v601 = vpop.f32.mrf.mxu0
    %602 = vdwg.mxu0
    %v603 = vmax.f32 %v597, 0.0
    %v604 = vmax.f32 %v599, 0.0
    %v605 = vpack.c.bf16 %v603, %v603
    %v606 = vpack.c.bf16 %v604, %v604
    %v607 = vld [vmem:[#allocation4] sm:$0xff]
    %v608 = vld [vmem:[#allocation4 + $0x8] sm:$0xff]
    %v609 = vld [vmem:[#allocation4 + $0x10] sm:$0xff]
    %v610 = vld [vmem:[#allocation4 + $0x18] sm:$0xff]
    %v611 = vld [vmem:[#allocation4 + $0x20] sm:$0xff]
    %v612 = vld [vmem:[#allocation4 + $0x28] sm:$0xff]
    %v613 = vld [vmem:[#allocation4 + $0x30] sm:$0xff]
    %v614 = vld [vmem:[#allocation4 + $0x38] sm:$0xff]
    %v615 = vld [vmem:[#allocation4 + $0x40] sm:$0xff]
    %v616 = vld [vmem:[#allocation4 + $0x48] sm:$0xff]
    %v617 = vld [vmem:[#allocation4 + $0x50] sm:$0xff]
    %v618 = vld [vmem:[#allocation4 + $0x58] sm:$0xff]
    %v619 = vld [vmem:[#allocation4 + $0x60] sm:$0xff]
    %v620 = vld [vmem:[#allocation4 + $0x68] sm:$0xff]
    %v621 = vld [vmem:[#allocation4 + $0x70] sm:$0xff]
    %v622 = vld [vmem:[#allocation4 + $0x78] sm:$0xff]
    %v623 = vld [vmem:[#allocation4 + $0x80] sm:$0xff]
    %v624 = vld [vmem:[#allocation4 + $0x88] sm:$0xff]
    %v625 = vld [vmem:[#allocation4 + $0x90] sm:$0xff]
    %v626 = vld [vmem:[#allocation4 + $0x98] sm:$0xff]
    %v627 = vld [vmem:[#allocation4 + $0xa0] sm:$0xff]
    %v628 = vld [vmem:[#allocation4 + $0xa8] sm:$0xff]
    %v629 = vld [vmem:[#allocation4 + $0xb0] sm:$0xff]
    %v630 = vld [vmem:[#allocation4 + $0xb8] sm:$0xff]
    %v631 = vld [vmem:[#allocation4 + $0xc0] sm:$0xff]
    %v632 = vld [vmem:[#allocation4 + $0xc8] sm:$0xff]
    %v633 = vld [vmem:[#allocation4 + $0xd0] sm:$0xff]
    %v634 = vld [vmem:[#allocation4 + $0xd8] sm:$0xff]
    %v635 = vld [vmem:[#allocation4 + $0xe0] sm:$0xff]
    %v636 = vld [vmem:[#allocation4 + $0xe8] sm:$0xff]
    %v637 = vld [vmem:[#allocation4 + $0xf0] sm:$0xff]
    %v638 = vld [vmem:[#allocation4 + $0xf8] sm:$0xff]
    %v639 = vld [vmem:[#allocation4 + $0x100] sm:$0xff]
    %v640 = vld [vmem:[#allocation4 + $0x108] sm:$0xff]
    %v641 = vld [vmem:[#allocation4 + $0x110] sm:$0xff]
    %v642 = vld [vmem:[#allocation4 + $0x118] sm:$0xff]
    %v643 = vld [vmem:[#allocation4 + $0x120] sm:$0xff]
    %v644 = vld [vmem:[#allocation4 + $0x128] sm:$0xff]
    %v645 = vld [vmem:[#allocation4 + $0x130] sm:$0xff]
    %v646 = vld [vmem:[#allocation4 + $0x138] sm:$0xff]
    %v647 = vld [vmem:[#allocation4 + $0x140] sm:$0xff]
    %v648 = vld [vmem:[#allocation4 + $0x148] sm:$0xff]
    %v649 = vld [vmem:[#allocation4 + $0x150] sm:$0xff]
    %v650 = vld [vmem:[#allocation4 + $0x158] sm:$0xff]
    %v651 = vld [vmem:[#allocation4 + $0x160] sm:$0xff]
    %v652 = vld [vmem:[#allocation4 + $0x168] sm:$0xff]
    %v653 = vld [vmem:[#allocation4 + $0x170] sm:$0xff]
    %v654 = vld [vmem:[#allocation4 + $0x178] sm:$0xff]
    %v655 = vld [vmem:[#allocation4 + $0x180] sm:$0xff]
    %v656 = vld [vmem:[#allocation4 + $0x188] sm:$0xff]
    %v657 = vld [vmem:[#allocation4 + $0x190] sm:$0xff]
    %v658 = vld [vmem:[#allocation4 + $0x198] sm:$0xff]
    %v659 = vld [vmem:[#allocation4 + $0x1a0] sm:$0xff]
    %v660 = vld [vmem:[#allocation4 + $0x1a8] sm:$0xff]
    %v661 = vld [vmem:[#allocation4 + $0x1b0] sm:$0xff]
    %v662 = vld [vmem:[#allocation4 + $0x1b8] sm:$0xff]
    %v663 = vld [vmem:[#allocation4 + $0x1c0] sm:$0xff]
    %v664 = vld [vmem:[#allocation4 + $0x1c8] sm:$0xff]
    %v665 = vld [vmem:[#allocation4 + $0x1d0] sm:$0xff]
    %v666 = vld [vmem:[#allocation4 + $0x1d8] sm:$0xff]
    %v667 = vld [vmem:[#allocation4 + $0x1e0] sm:$0xff]
    %v668 = vld [vmem:[#allocation4 + $0x1e8] sm:$0xff]
    %v669 = vld [vmem:[#allocation4 + $0x1f0] sm:$0xff]
    %v670 = vld [vmem:[#allocation4 + $0x1f8] sm:$0xff]
    %v671 = vld [vmem:[#allocation4 + $0x200] sm:$0xff]
    %v672 = vld [vmem:[#allocation4 + $0x208] sm:$0xff]
    %v673 = vld [vmem:[#allocation4 + $0x210] sm:$0xff]
    %v674 = vld [vmem:[#allocation4 + $0x218] sm:$0xff]
    %v675 = vld [vmem:[#allocation4 + $0x220] sm:$0xff]
    %v676 = vld [vmem:[#allocation4 + $0x228] sm:$0xff]
    %v677 = vld [vmem:[#allocation4 + $0x230] sm:$0xff]
    %v678 = vld [vmem:[#allocation4 + $0x238] sm:$0xff]
    %v679 = vld [vmem:[#allocation4 + $0x240] sm:$0xff]
    %v680 = vld [vmem:[#allocation4 + $0x248] sm:$0xff]
    %v681 = vld [vmem:[#allocation4 + $0x250] sm:$0xff]
    %v682 = vld [vmem:[#allocation4 + $0x258] sm:$0xff]
    %v683 = vld [vmem:[#allocation4 + $0x260] sm:$0xff]
    %v684 = vld [vmem:[#allocation4 + $0x268] sm:$0xff]
    %v685 = vld [vmem:[#allocation4 + $0x270] sm:$0xff]
    %v686 = vld [vmem:[#allocation4 + $0x278] sm:$0xff]
    %v687 = vld [vmem:[#allocation4 + $0x280] sm:$0xff]
    %v688 = vld [vmem:[#allocation4 + $0x288] sm:$0xff]
    %v689 = vld [vmem:[#allocation4 + $0x290] sm:$0xff]
    %v690 = vld [vmem:[#allocation4 + $0x298] sm:$0xff]
    %v691 = vld [vmem:[#allocation4 + $0x2a0] sm:$0xff]
    %v692 = vld [vmem:[#allocation4 + $0x2a8] sm:$0xff]
    %v693 = vld [vmem:[#allocation4 + $0x2b0] sm:$0xff]
    %v694 = vld [vmem:[#allocation4 + $0x2b8] sm:$0xff]
    %v695 = vld [vmem:[#allocation4 + $0x2c0] sm:$0xff]
    %v696 = vld [vmem:[#allocation4 + $0x2c8] sm:$0xff]
    %v697 = vld [vmem:[#allocation4 + $0x2d0] sm:$0xff]
    %v698 = vld [vmem:[#allocation4 + $0x2d8] sm:$0xff]
    %v699 = vld [vmem:[#allocation4 + $0x2e0] sm:$0xff]
    %v700 = vld [vmem:[#allocation4 + $0x2e8] sm:$0xff]
    %v701 = vld [vmem:[#allocation4 + $0x2f0] sm:$0xff]
    %v702 = vld [vmem:[#allocation4 + $0x2f8] sm:$0xff]
    %v704 = vlaneseq
    %v705 = vshrl.u32 %v704, 7
    %v706 = vsub.s32 0, %v705
    %v707 = vrot.slane %v70, %v706
    %v708 = vlaneseq
    %v709 = vshrl.u32 %v708, 7
    %v710 = vsub.s32 1, %v709
    %v711 = vrot.slane %v70, %v710
    %v712 = vlaneseq
    %v713 = vshrl.u32 %v712, 7
    %v714 = vsub.s32 2, %v713
    %v715 = vrot.slane %v70, %v714
    %v716 = vlaneseq
    %v717 = vshrl.u32 %v716, 7
    %v718 = vsub.s32 3, %v717
    %v719 = vrot.slane %v70, %v718
    %v720 = vlaneseq
    %v721 = vshrl.u32 %v720, 7
    %v722 = vsub.s32 4, %v721
    %v723 = vrot.slane %v70, %v722
    %v724 = vlaneseq
    %v725 = vshrl.u32 %v724, 7
    %v726 = vsub.s32 5, %v725
    %v727 = vrot.slane %v70, %v726
    %v830 = vunpack.c.l.b16 %v607
    %v831 = vunpack.c.h.b16 %v607
    %v832 = vunpack.c.l.b16 %v608
    %v833 = vunpack.c.h.b16 %v608
    %v834 = vunpack.c.l.b16 %v609
    %v835 = vunpack.c.h.b16 %v609
    %v836 = vunpack.c.l.b16 %v610
    %v837 = vunpack.c.h.b16 %v610
    %v838 = vunpack.c.l.b16 %v611
    %v839 = vunpack.c.h.b16 %v611
    %v840 = vunpack.c.l.b16 %v612
    %v841 = vunpack.c.h.b16 %v612
    %v842 = vunpack.c.l.b16 %v613
    %v843 = vunpack.c.h.b16 %v613
    %v844 = vunpack.c.l.b16 %v614
    %v845 = vunpack.c.h.b16 %v614
    %v846 = vunpack.c.l.b16 %v615
    %v847 = vunpack.c.h.b16 %v615
    %v848 = vunpack.c.l.b16 %v616
    %v849 = vunpack.c.h.b16 %v616
    %v850 = vunpack.c.l.b16 %v617
    %v851 = vunpack.c.h.b16 %v617
    %v852 = vunpack.c.l.b16 %v618
    %v853 = vunpack.c.h.b16 %v618
    %v854 = vunpack.c.l.b16 %v619
    %v855 = vunpack.c.h.b16 %v619
    %v856 = vunpack.c.l.b16 %v620
    %v857 = vunpack.c.h.b16 %v620
    %v858 = vunpack.c.l.b16 %v621
    %v859 = vunpack.c.h.b16 %v621
    %v860 = vunpack.c.l.b16 %v622
    %v861 = vunpack.c.h.b16 %v622
    %v862 = vunpack.c.l.b16 %v623
    %v863 = vunpack.c.h.b16 %v623
    %v864 = vunpack.c.l.b16 %v624
    %v865 = vunpack.c.h.b16 %v624
    %v866 = vunpack.c.l.b16 %v625
    %v867 = vunpack.c.h.b16 %v625
    %v868 = vunpack.c.l.b16 %v626
    %v869 = vunpack.c.h.b16 %v626
    %v870 = vunpack.c.l.b16 %v627
    %v871 = vunpack.c.h.b16 %v627
    %v872 = vunpack.c.l.b16 %v628
    %v873 = vunpack.c.h.b16 %v628
    %v874 = vunpack.c.l.b16 %v629
    %v875 = vunpack.c.h.b16 %v629
    %v876 = vunpack.c.l.b16 %v630
    %v877 = vunpack.c.h.b16 %v630
    %v878 = vunpack.c.l.b16 %v631
    %v879 = vunpack.c.h.b16 %v631
    %v880 = vunpack.c.l.b16 %v632
    %v881 = vunpack.c.h.b16 %v632
    %v882 = vunpack.c.l.b16 %v633
    %v883 = vunpack.c.h.b16 %v633
    %v884 = vunpack.c.l.b16 %v634
    %v885 = vunpack.c.h.b16 %v634
    %v886 = vunpack.c.l.b16 %v635
    %v887 = vunpack.c.h.b16 %v635
    %v888 = vunpack.c.l.b16 %v636
    %v889 = vunpack.c.h.b16 %v636
    %v890 = vunpack.c.l.b16 %v637
    %v891 = vunpack.c.h.b16 %v637
    %v892 = vunpack.c.l.b16 %v638
    %v893 = vunpack.c.h.b16 %v638
    %v894 = vunpack.c.l.b16 %v639
    %v895 = vunpack.c.h.b16 %v639
    %v896 = vunpack.c.l.b16 %v640
    %v897 = vunpack.c.h.b16 %v640
    %v898 = vunpack.c.l.b16 %v641
    %v899 = vunpack.c.h.b16 %v641
    %v900 = vunpack.c.l.b16 %v642
    %v901 = vunpack.c.h.b16 %v642
    %v902 = vunpack.c.l.b16 %v643
    %v903 = vunpack.c.h.b16 %v643
    %v904 = vunpack.c.l.b16 %v644
    %v905 = vunpack.c.h.b16 %v644
    %v906 = vunpack.c.l.b16 %v645
    %v907 = vunpack.c.h.b16 %v645
    %v908 = vunpack.c.l.b16 %v646
    %v909 = vunpack.c.h.b16 %v646
    %v910 = vunpack.c.l.b16 %v647
    %v911 = vunpack.c.h.b16 %v647
    %v912 = vunpack.c.l.b16 %v648
    %v913 = vunpack.c.h.b16 %v648
    %v914 = vunpack.c.l.b16 %v649
    %v915 = vunpack.c.h.b16 %v649
    %v916 = vunpack.c.l.b16 %v650
    %v917 = vunpack.c.h.b16 %v650
    %v918 = vunpack.c.l.b16 %v651
    %v919 = vunpack.c.h.b16 %v651
    %v920 = vunpack.c.l.b16 %v652
    %v921 = vunpack.c.h.b16 %v652
    %v922 = vunpack.c.l.b16 %v653
    %v923 = vunpack.c.h.b16 %v653
    %v924 = vunpack.c.l.b16 %v654
    %v925 = vunpack.c.h.b16 %v654
    %v926 = vunpack.c.l.b16 %v655
    %v927 = vunpack.c.h.b16 %v655
    %v928 = vunpack.c.l.b16 %v656
    %v929 = vunpack.c.h.b16 %v656
    %v930 = vunpack.c.l.b16 %v657
    %v931 = vunpack.c.h.b16 %v657
    %v932 = vunpack.c.l.b16 %v658
    %v933 = vunpack.c.h.b16 %v658
    %v934 = vunpack.c.l.b16 %v659
    %v935 = vunpack.c.h.b16 %v659
    %v936 = vunpack.c.l.b16 %v660
    %v937 = vunpack.c.h.b16 %v660
    %v938 = vunpack.c.l.b16 %v661
    %v939 = vunpack.c.h.b16 %v661
    %v940 = vunpack.c.l.b16 %v662
    %v941 = vunpack.c.h.b16 %v662
    %v942 = vunpack.c.l.b16 %v663
    %v943 = vunpack.c.h.b16 %v663
    %v944 = vunpack.c.l.b16 %v664
    %v945 = vunpack.c.h.b16 %v664
    %v946 = vunpack.c.l.b16 %v665
    %v947 = vunpack.c.h.b16 %v665
    %v948 = vunpack.c.l.b16 %v666
    %v949 = vunpack.c.h.b16 %v666
    %v950 = vunpack.c.l.b16 %v667
    %v951 = vunpack.c.h.b16 %v667
    %v952 = vunpack.c.l.b16 %v668
    %v953 = vunpack.c.h.b16 %v668
    %v954 = vunpack.c.l.b16 %v669
    %v955 = vunpack.c.h.b16 %v669
    %v956 = vunpack.c.l.b16 %v670
    %v957 = vunpack.c.h.b16 %v670
    %v958 = vunpack.c.l.b16 %v671
    %v959 = vunpack.c.h.b16 %v671
    %v960 = vunpack.c.l.b16 %v672
    %v961 = vunpack.c.h.b16 %v672
    %v962 = vunpack.c.l.b16 %v673
    %v963 = vunpack.c.h.b16 %v673
    %v964 = vunpack.c.l.b16 %v674
    %v965 = vunpack.c.h.b16 %v674
    %v966 = vunpack.c.l.b16 %v675
    %v967 = vunpack.c.h.b16 %v675
    %v968 = vunpack.c.l.b16 %v676
    %v969 = vunpack.c.h.b16 %v676
    %v970 = vunpack.c.l.b16 %v677
    %v971 = vunpack.c.h.b16 %v677
    %v972 = vunpack.c.l.b16 %v678
    %v973 = vunpack.c.h.b16 %v678
    %v974 = vunpack.c.l.b16 %v679
    %v975 = vunpack.c.h.b16 %v679
    %v976 = vunpack.c.l.b16 %v680
    %v977 = vunpack.c.h.b16 %v680
    %v978 = vunpack.c.l.b16 %v681
    %v979 = vunpack.c.h.b16 %v681
    %v980 = vunpack.c.l.b16 %v682
    %v981 = vunpack.c.h.b16 %v682
    %v982 = vunpack.c.l.b16 %v683
    %v983 = vunpack.c.h.b16 %v683
    %v984 = vunpack.c.l.b16 %v684
    %v985 = vunpack.c.h.b16 %v684
    %v986 = vunpack.c.l.b16 %v685
    %v987 = vunpack.c.h.b16 %v685
    %v988 = vunpack.c.l.b16 %v686
    %v989 = vunpack.c.h.b16 %v686
    %v990 = vunpack.c.l.b16 %v687
    %v991 = vunpack.c.h.b16 %v687
    %v992 = vunpack.c.l.b16 %v688
    %v993 = vunpack.c.h.b16 %v688
    %v994 = vunpack.c.l.b16 %v689
    %v995 = vunpack.c.h.b16 %v689
    %v996 = vunpack.c.l.b16 %v690
    %v997 = vunpack.c.h.b16 %v690
    %v998 = vunpack.c.l.b16 %v691
    %v999 = vunpack.c.h.b16 %v691
    %v1000 = vunpack.c.l.b16 %v692
    %v1001 = vunpack.c.h.b16 %v692
    %v1002 = vunpack.c.l.b16 %v693
    %v1003 = vunpack.c.h.b16 %v693
    %v1004 = vunpack.c.l.b16 %v694
    %v1005 = vunpack.c.h.b16 %v694
    %v1006 = vunpack.c.l.b16 %v695
    %v1007 = vunpack.c.h.b16 %v695
    %v1008 = vunpack.c.l.b16 %v696
    %v1009 = vunpack.c.h.b16 %v696
    %v1010 = vunpack.c.l.b16 %v697
    %v1011 = vunpack.c.h.b16 %v697
    %v1012 = vunpack.c.l.b16 %v698
    %v1013 = vunpack.c.h.b16 %v698
    %v1014 = vunpack.c.l.b16 %v699
    %v1015 = vunpack.c.h.b16 %v699
    %v1016 = vunpack.c.l.b16 %v700
    %v1017 = vunpack.c.h.b16 %v700
    %v1018 = vunpack.c.l.b16 %v701
    %v1019 = vunpack.c.h.b16 %v701
    %v1020 = vunpack.c.l.b16 %v702
    %v1021 = vunpack.c.h.b16 %v702
    %v1022 = vpack.c.b16 %v836, %v830
    %v1023 = vpack.c.b16 %v837, %v831
    %v1024 = vpack.c.b16 %v838, %v832
    %v1025 = vpack.c.b16 %v839, %v833
    %v1026 = vpack.c.b16 %v840, %v834
    %v1027 = vpack.c.b16 %v841, %v835
    %v1028 = vpack.c.b16 %v848, %v842
    %v1029 = vpack.c.b16 %v849, %v843
    %v1030 = vpack.c.b16 %v850, %v844
    %v1031 = vpack.c.b16 %v851, %v845
    %v1032 = vpack.c.b16 %v852, %v846
    %v1033 = vpack.c.b16 %v853, %v847
    %v1034 = vpack.c.b16 %v860, %v854
    %v1035 = vpack.c.b16 %v861, %v855
    %v1036 = vpack.c.b16 %v862, %v856
    %v1037 = vpack.c.b16 %v863, %v857
    %v1038 = vpack.c.b16 %v864, %v858
    %v1039 = vpack.c.b16 %v865, %v859
    %v1040 = vpack.c.b16 %v872, %v866
    %v1041 = vpack.c.b16 %v873, %v867
    %v1042 = vpack.c.b16 %v874, %v868
    %v1043 = vpack.c.b16 %v875, %v869
    %v1044 = vpack.c.b16 %v876, %v870
    %v1045 = vpack.c.b16 %v877, %v871
    %v1046 = vpack.c.b16 %v884, %v878
    %v1047 = vpack.c.b16 %v885, %v879
    %v1048 = vpack.c.b16 %v886, %v880
    %v1049 = vpack.c.b16 %v887, %v881
    %v1050 = vpack.c.b16 %v888, %v882
    %v1051 = vpack.c.b16 %v889, %v883
    %v1052 = vpack.c.b16 %v896, %v890
    %v1053 = vpack.c.b16 %v897, %v891
    %v1054 = vpack.c.b16 %v898, %v892
    %v1055 = vpack.c.b16 %v899, %v893
    %v1056 = vpack.c.b16 %v900, %v894
    %v1057 = vpack.c.b16 %v901, %v895
    %v1058 = vpack.c.b16 %v908, %v902
    %v1059 = vpack.c.b16 %v909, %v903
    %v1060 = vpack.c.b16 %v910, %v904
    %v1061 = vpack.c.b16 %v911, %v905
    %v1062 = vpack.c.b16 %v912, %v906
    %v1063 = vpack.c.b16 %v913, %v907
    %v1064 = vpack.c.b16 %v920, %v914
    %v1065 = vpack.c.b16 %v921, %v915
    %v1066 = vpack.c.b16 %v922, %v916
    %v1067 = vpack.c.b16 %v923, %v917
    %v1068 = vpack.c.b16 %v924, %v918
    %v1069 = vpack.c.b16 %v925, %v919
    %v1070 = vpack.c.b16 %v932, %v926
    %v1071 = vpack.c.b16 %v933, %v927
    %v1072 = vpack.c.b16 %v934, %v928
    %v1073 = vpack.c.b16 %v935, %v929
    %v1074 = vpack.c.b16 %v936, %v930
    %v1075 = vpack.c.b16 %v937, %v931
    %v1076 = vpack.c.b16 %v944, %v938
    %v1077 = vpack.c.b16 %v945, %v939
    %v1078 = vpack.c.b16 %v946, %v940
    %v1079 = vpack.c.b16 %v947, %v941
    %v1080 = vpack.c.b16 %v948, %v942
    %v1081 = vpack.c.b16 %v949, %v943
    %v1082 = vpack.c.b16 %v956, %v950
    %v1083 = vpack.c.b16 %v957, %v951
    %v1084 = vpack.c.b16 %v958, %v952
    %v1085 = vpack.c.b16 %v959, %v953
    %v1086 = vpack.c.b16 %v960, %v954
    %v1087 = vpack.c.b16 %v961, %v955
    %v1088 = vpack.c.b16 %v968, %v962
    %v1089 = vpack.c.b16 %v969, %v963
    %v1090 = vpack.c.b16 %v970, %v964
    %v1091 = vpack.c.b16 %v971, %v965
    %v1092 = vpack.c.b16 %v972, %v966
    %v1093 = vpack.c.b16 %v973, %v967
    %v1094 = vpack.c.b16 %v980, %v974
    %v1095 = vpack.c.b16 %v981, %v975
    %v1096 = vpack.c.b16 %v982, %v976
    %v1097 = vpack.c.b16 %v983, %v977
    %v1098 = vpack.c.b16 %v984, %v978
    %v1099 = vpack.c.b16 %v985, %v979
    %v1100 = vpack.c.b16 %v992, %v986
    %v1101 = vpack.c.b16 %v993, %v987
    %v1102 = vpack.c.b16 %v994, %v988
    %v1103 = vpack.c.b16 %v995, %v989
    %v1104 = vpack.c.b16 %v996, %v990
    %v1105 = vpack.c.b16 %v997, %v991
    %v1106 = vpack.c.b16 %v1004, %v998
    %v1107 = vpack.c.b16 %v1005, %v999
    %v1108 = vpack.c.b16 %v1006, %v1000
    %v1109 = vpack.c.b16 %v1007, %v1001
    %v1110 = vpack.c.b16 %v1008, %v1002
    %v1111 = vpack.c.b16 %v1009, %v1003
    %v1112 = vpack.c.b16 %v1016, %v1010
    %v1113 = vpack.c.b16 %v1017, %v1011
    %v1114 = vpack.c.b16 %v1018, %v1012
    %v1115 = vpack.c.b16 %v1019, %v1013
    %v1116 = vpack.c.b16 %v1020, %v1014
    %v1117 = vpack.c.b16 %v1021, %v1015
    %1214 = vmatprep.subr.bf16.mxu0 %v1065
    %1215 = vmatpush1.bf16.msra.mxu0 %v1064
    %1216 = vmatprep.subr.bf16.mxu0 %v1059
    %1217 = vmatpush1.bf16.msra.mxu0 %v1058
    %1218 = vmatprep.subr.bf16.mxu0 %v1053
    %1219 = vmatpush1.bf16.msra.mxu0 %v1052
    %1220 = vmatprep.subr.bf16.mxu0 %v1047
    %1221 = vmatpush1.bf16.msra.mxu0 %v1046
    %1222 = vmatprep.subr.bf16.mxu0 %v1041
    %1223 = vmatpush1.bf16.msra.mxu0 %v1040
    %1224 = vmatprep.subr.bf16.mxu0 %v1035
    %1225 = vmatpush1.bf16.msra.mxu0 %v1034
    %1226 = vmatprep.subr.bf16.mxu0 %v1029
    %1227 = vmatpush1.bf16.msra.mxu0 %v1028
    %1228 = vmatprep.subr.bf16.mxu0 %v1023
    %1229 = vmatpush1.bf16.msra.mxu0 %v1022
    %1230 = vmatprep.subr.bf16.mxu0 %v1113
    %1231 = vmatpush2.bf16.msra.mxu0 %v1112
    %1232 = vmatprep.subr.bf16.mxu0 %v1107
    %1233 = vmatpush2.bf16.msra.mxu0 %v1106
    %1234 = vmatprep.subr.bf16.mxu0 %v1101
    %1235 = vmatpush2.bf16.msra.mxu0 %v1100
    %1236 = vmatprep.subr.bf16.mxu0 %v1095
    %1237 = vmatpush2.bf16.msra.mxu0 %v1094
    %1238 = vmatprep.subr.bf16.mxu0 %v1089
    %1239 = vmatpush2.bf16.msra.mxu0 %v1088
    %1240 = vmatprep.subr.bf16.mxu0 %v1083
    %1241 = vmatpush2.bf16.msra.mxu0 %v1082
    %1242 = vmatprep.subr.bf16.mxu0 %v1077
    %1243 = vmatpush2.bf16.msra.mxu0 %v1076
    %1244 = vmatprep.subr.bf16.mxu0 %v1071
    %1245 = vmatpush2.bf16.msra.mxu0 %v1070
    %1246 = vmatprep.mubr.bf16.mxu0 %v606
    %1247 = vmatmul.mubr.bf16.gmra.mxu0 %v605
    %v1248 = vpop.f32.mrf.mxu0
    %v1249 = vadd.f32 %v707, %v1248
    %v1250 = vpop.f32.mrf.mxu0
    %v1251 = vadd.f32 %v711, %v1250
    %v1252 = vpop.f32.mrf.mxu0
    %v1253 = vpop.f32.mrf.mxu0
    %1254 = vdwg.mxu0
    %1255 = vmatprep.subr.bf16.mxu0 %v1067
    %1256 = vmatpush1.bf16.msra.mxu0 %v1066
    %1257 = vmatprep.subr.bf16.mxu0 %v1061
    %1258 = vmatpush1.bf16.msra.mxu0 %v1060
    %1259 = vmatprep.subr.bf16.mxu0 %v1055
    %1260 = vmatpush1.bf16.msra.mxu0 %v1054
    %1261 = vmatprep.subr.bf16.mxu0 %v1049
    %1262 = vmatpush1.bf16.msra.mxu0 %v1048
    %1263 = vmatprep.subr.bf16.mxu0 %v1043
    %1264 = vmatpush1.bf16.msra.mxu0 %v1042
    %1265 = vmatprep.subr.bf16.mxu0 %v1037
    %1266 = vmatpush1.bf16.msra.mxu0 %v1036
    %1267 = vmatprep.subr.bf16.mxu0 %v1031
    %1268 = vmatpush1.bf16.msra.mxu0 %v1030
    %1269 = vmatprep.subr.bf16.mxu0 %v1025
    %1270 = vmatpush1.bf16.msra.mxu0 %v1024
    %1271 = vmatprep.subr.bf16.mxu0 %v1115
    %1272 = vmatpush2.bf16.msra.mxu0 %v1114
    %1273 = vmatprep.subr.bf16.mxu0 %v1109
    %1274 = vmatpush2.bf16.msra.mxu0 %v1108
    %1275 = vmatprep.subr.bf16.mxu0 %v1103
    %1276 = vmatpush2.bf16.msra.mxu0 %v1102
    %1277 = vmatprep.subr.bf16.mxu0 %v1097
    %1278 = vmatpush2.bf16.msra.mxu0 %v1096
    %1279 = vmatprep.subr.bf16.mxu0 %v1091
    %1280 = vmatpush2.bf16.msra.mxu0 %v1090
    %1281 = vmatprep.subr.bf16.mxu0 %v1085
    %1282 = vmatpush2.bf16.msra.mxu0 %v1084
    %1283 = vmatprep.subr.bf16.mxu0 %v1079
    %1284 = vmatpush2.bf16.msra.mxu0 %v1078
    %1285 = vmatprep.subr.bf16.mxu0 %v1073
    %1286 = vmatpush2.bf16.msra.mxu0 %v1072
    %1287 = vmatprep.mubr.bf16.mxu0 %v606
    %1288 = vmatmul.mubr.bf16.gmra.mxu0 %v605
    %v1289 = vpop.f32.mrf.mxu0
    %v1290 = vadd.f32 %v715, %v1289
    %v1291 = vpop.f32.mrf.mxu0
    %v1292 = vadd.f32 %v719, %v1291
    %v1293 = vpop.f32.mrf.mxu0
    %v1294 = vpop.f32.mrf.mxu0
    %1295 = vdwg.mxu0
    %1296 = vmatprep.subr.bf16.mxu0 %v1069
    %1297 = vmatpush1.bf16.msra.mxu0 %v1068
    %1298 = vmatprep.subr.bf16.mxu0 %v1063
    %1299 = vmatpush1.bf16.msra.mxu0 %v1062
    %1300 = vmatprep.subr.bf16.mxu0 %v1057
    %1301 = vmatpush1.bf16.msra.mxu0 %v1056
    %1302 = vmatprep.subr.bf16.mxu0 %v1051
    %1303 = vmatpush1.bf16.msra.mxu0 %v1050
    %1304 = vmatprep.subr.bf16.mxu0 %v1045
    %1305 = vmatpush1.bf16.msra.mxu0 %v1044
    %1306 = vmatprep.subr.bf16.mxu0 %v1039
    %1307 = vmatpush1.bf16.msra.mxu0 %v1038
    %1308 = vmatprep.subr.bf16.mxu0 %v1033
    %1309 = vmatpush1.bf16.msra.mxu0 %v1032
    %1310 = vmatprep.subr.bf16.mxu0 %v1027
    %1311 = vmatpush1.bf16.msra.mxu0 %v1026
    %1312 = vmatprep.subr.bf16.mxu0 %v1117
    %1313 = vmatpush2.bf16.msra.mxu0 %v1116
    %1314 = vmatprep.subr.bf16.mxu0 %v1111
    %1315 = vmatpush2.bf16.msra.mxu0 %v1110
    %1316 = vmatprep.subr.bf16.mxu0 %v1105
    %1317 = vmatpush2.bf16.msra.mxu0 %v1104
    %1318 = vmatprep.subr.bf16.mxu0 %v1099
    %1319 = vmatpush2.bf16.msra.mxu0 %v1098
    %1320 = vmatprep.subr.bf16.mxu0 %v1093
    %1321 = vmatpush2.bf16.msra.mxu0 %v1092
    %1322 = vmatprep.subr.bf16.mxu0 %v1087
    %1323 = vmatpush2.bf16.msra.mxu0 %v1086
    %1324 = vmatprep.subr.bf16.mxu0 %v1081
    %1325 = vmatpush2.bf16.msra.mxu0 %v1080
    %1326 = vmatprep.subr.bf16.mxu0 %v1075
    %1327 = vmatpush2.bf16.msra.mxu0 %v1074
    %1328 = vmatprep.mubr.bf16.mxu0 %v606
    %1329 = vmatmul.mubr.bf16.gmra.mxu0 %v605
    %v1330 = vpop.f32.mrf.mxu0
    %v1331 = vadd.f32 %v723, %v1330
    %v1332 = vpop.f32.mrf.mxu0
    %v1333 = vadd.f32 %v727, %v1332
    %v1334 = vpop.f32.mrf.mxu0
    %v1335 = vpop.f32.mrf.mxu0
    %1336 = vdwg.mxu0
    %v1337 = vmax.f32 %v1249, 0.0
    %v1338 = vmax.f32 %v1251, 0.0
    %v1339 = vmax.f32 %v1290, 0.0
    %v1340 = vmax.f32 %v1292, 0.0
    %v1341 = vmax.f32 %v1331, 0.0
    %v1342 = vmax.f32 %v1333, 0.0
    %v1343 = vpack.c.bf16 %v1337, %v1337
    %v1344 = vpack.c.bf16 %v1338, %v1338
    %v1345 = vpack.c.bf16 %v1339, %v1339
    %v1346 = vpack.c.bf16 %v1340, %v1340
    %v1347 = vpack.c.bf16 %v1341, %v1341
    %v1348 = vpack.c.bf16 %v1342, %v1342
    %v1349 = vld [vmem:[%s5] sm:$0xf]
    %v1350 = vld [vmem:[%s5 + $0x4] sm:$0xf]
    %v1351 = vld [vmem:[%s5 + $0x8] sm:$0xf]
    %v1352 = vld [vmem:[%s5 + $0xc] sm:$0xf]
    %v1353 = vld [vmem:[%s5 + $0x10] sm:$0xf]
    %v1354 = vld [vmem:[%s5 + $0x14] sm:$0xf]
    %v1355 = vld [vmem:[%s5 + $0x18] sm:$0xf]
    %v1356 = vld [vmem:[%s5 + $0x1c] sm:$0xf]
    %v1357 = vld [vmem:[%s5 + $0x20] sm:$0xf]
    %v1358 = vld [vmem:[%s5 + $0x24] sm:$0xf]
    %v1359 = vld [vmem:[%s5 + $0x28] sm:$0xf]
    %v1360 = vld [vmem:[%s5 + $0x2c] sm:$0xf]
    %v1361 = vld [vmem:[%s5 + $0x30] sm:$0xf]
    %v1362 = vld [vmem:[%s5 + $0x34] sm:$0xf]
    %v1363 = vld [vmem:[%s5 + $0x38] sm:$0xf]
    %v1364 = vld [vmem:[%s5 + $0x3c] sm:$0xf]
    %v1365 = vld [vmem:[%s5 + $0x40] sm:$0xf]
    %v1366 = vld [vmem:[%s5 + $0x44] sm:$0xf]
    %v1367 = vld [vmem:[%s5 + $0x48] sm:$0xf]
    %v1368 = vld [vmem:[%s5 + $0x4c] sm:$0xf]
    %v1369 = vld [vmem:[%s5 + $0x50] sm:$0xf]
    %v1370 = vld [vmem:[%s5 + $0x54] sm:$0xf]
    %v1371 = vld [vmem:[%s5 + $0x58] sm:$0xf]
    %v1372 = vld [vmem:[%s5 + $0x5c] sm:$0xf]
    %v1373 = vld [vmem:[%s5 + $0x60] sm:$0xf]
    %v1374 = vld [vmem:[%s5 + $0x64] sm:$0xf]
    %v1375 = vld [vmem:[%s5 + $0x68] sm:$0xf]
    %v1376 = vld [vmem:[%s5 + $0x6c] sm:$0xf]
    %v1377 = vld [vmem:[%s5 + $0x70] sm:$0xf]
    %v1378 = vld [vmem:[%s5 + $0x74] sm:$0xf]
    %v1379 = vld [vmem:[%s5 + $0x78] sm:$0xf]
    %v1380 = vld [vmem:[%s5 + $0x7c] sm:$0xf]
    %v1381 = vld [vmem:[%s5 + $0x80] sm:$0xf]
    %v1382 = vld [vmem:[%s5 + $0x84] sm:$0xf]
    %v1383 = vld [vmem:[%s5 + $0x88] sm:$0xf]
    %v1384 = vld [vmem:[%s5 + $0x8c] sm:$0xf]
    %v1385 = vld [vmem:[%s5 + $0x90] sm:$0xf]
    %v1386 = vld [vmem:[%s5 + $0x94] sm:$0xf]
    %v1387 = vld [vmem:[%s5 + $0x98] sm:$0xf]
    %v1388 = vld [vmem:[%s5 + $0x9c] sm:$0xf]
    %v1389 = vld [vmem:[%s5 + $0xa0] sm:$0xf]
    %v1390 = vld [vmem:[%s5 + $0xa4] sm:$0xf]
    %v1391 = vld [vmem:[%s5 + $0xa8] sm:$0xf]
    %v1392 = vld [vmem:[%s5 + $0xac] sm:$0xf]
    %v1393 = vld [vmem:[%s5 + $0xb0] sm:$0xf]
    %v1394 = vld [vmem:[%s5 + $0xb4] sm:$0xf]
    %v1395 = vld [vmem:[%s5 + $0xb8] sm:$0xf]
    %v1396 = vld [vmem:[%s5 + $0xbc] sm:$0xf]
    %v1397 = vld [vmem:[%s5 + $0xc0] sm:$0xf]
    %v1398 = vld [vmem:[%s5 + $0xc4] sm:$0xf]
    %v1399 = vld [vmem:[%s5 + $0xc8] sm:$0xf]
    %v1400 = vld [vmem:[%s5 + $0xcc] sm:$0xf]
    %v1401 = vld [vmem:[%s5 + $0xd0] sm:$0xf]
    %v1402 = vld [vmem:[%s5 + $0xd4] sm:$0xf]
    %v1403 = vld [vmem:[%s5 + $0xd8] sm:$0xf]
    %v1404 = vld [vmem:[%s5 + $0xdc] sm:$0xf]
    %v1405 = vld [vmem:[%s5 + $0xe0] sm:$0xf]
    %v1406 = vld [vmem:[%s5 + $0xe4] sm:$0xf]
    %v1407 = vld [vmem:[%s5 + $0xe8] sm:$0xf]
    %v1408 = vld [vmem:[%s5 + $0xec] sm:$0xf]
    %v1409 = vld [vmem:[%s5 + $0xf0] sm:$0xf]
    %v1410 = vld [vmem:[%s5 + $0xf4] sm:$0xf]
    %v1411 = vld [vmem:[%s5 + $0xf8] sm:$0xf]
    %v1412 = vld [vmem:[%s5 + $0xfc] sm:$0xf]
    %v1413 = vld [vmem:[%s5 + $0x100] sm:$0xf]
    %v1414 = vld [vmem:[%s5 + $0x104] sm:$0xf]
    %v1415 = vld [vmem:[%s5 + $0x108] sm:$0xf]
    %v1416 = vld [vmem:[%s5 + $0x10c] sm:$0xf]
    %v1417 = vld [vmem:[%s5 + $0x110] sm:$0xf]
    %v1418 = vld [vmem:[%s5 + $0x114] sm:$0xf]
    %v1419 = vld [vmem:[%s5 + $0x118] sm:$0xf]
    %v1420 = vld [vmem:[%s5 + $0x11c] sm:$0xf]
    %v1421 = vld [vmem:[%s5 + $0x120] sm:$0xf]
    %v1422 = vld [vmem:[%s5 + $0x124] sm:$0xf]
    %v1423 = vld [vmem:[%s5 + $0x128] sm:$0xf]
    %v1424 = vld [vmem:[%s5 + $0x12c] sm:$0xf]
    %v1425 = vld [vmem:[%s5 + $0x130] sm:$0xf]
    %v1426 = vld [vmem:[%s5 + $0x134] sm:$0xf]
    %v1427 = vld [vmem:[%s5 + $0x138] sm:$0xf]
    %v1428 = vld [vmem:[%s5 + $0x13c] sm:$0xf]
    %v1429 = vld [vmem:[%s5 + $0x140] sm:$0xf]
    %v1430 = vld [vmem:[%s5 + $0x144] sm:$0xf]
    %v1431 = vld [vmem:[%s5 + $0x148] sm:$0xf]
    %v1432 = vld [vmem:[%s5 + $0x14c] sm:$0xf]
    %v1433 = vld [vmem:[%s5 + $0x150] sm:$0xf]
    %v1434 = vld [vmem:[%s5 + $0x154] sm:$0xf]
    %v1435 = vld [vmem:[%s5 + $0x158] sm:$0xf]
    %v1436 = vld [vmem:[%s5 + $0x15c] sm:$0xf]
    %v1437 = vld [vmem:[%s5 + $0x160] sm:$0xf]
    %v1438 = vld [vmem:[%s5 + $0x164] sm:$0xf]
    %v1439 = vld [vmem:[%s5 + $0x168] sm:$0xf]
    %v1440 = vld [vmem:[%s5 + $0x16c] sm:$0xf]
    %v1441 = vld [vmem:[%s5 + $0x170] sm:$0xf]
    %v1442 = vld [vmem:[%s5 + $0x174] sm:$0xf]
    %v1443 = vld [vmem:[%s5 + $0x178] sm:$0xf]
    %v1444 = vld [vmem:[%s5 + $0x17c] sm:$0xf]
    %v1446 = vlaneseq
    %v1447 = vshrl.u32 %v1446, 7
    %v1448 = vsub.s32 0, %v1447
    %v1449 = vrot.slane %v71, %v1448
    %v1547 = vunpack.c.l.b16 %v1349
    %v1548 = vunpack.c.l.b16 %v1350
    %v1549 = vunpack.c.l.b16 %v1351
    %v1550 = vunpack.c.l.b16 %v1352
    %v1551 = vunpack.c.l.b16 %v1353
    %v1552 = vunpack.c.l.b16 %v1354
    %v1553 = vunpack.c.l.b16 %v1355
    %v1554 = vunpack.c.l.b16 %v1356
    %v1555 = vunpack.c.l.b16 %v1357
    %v1556 = vunpack.c.l.b16 %v1358
    %v1557 = vunpack.c.l.b16 %v1359
    %v1558 = vunpack.c.l.b16 %v1360
    %v1559 = vunpack.c.l.b16 %v1361
    %v1560 = vunpack.c.l.b16 %v1362
    %v1561 = vunpack.c.l.b16 %v1363
    %v1562 = vunpack.c.l.b16 %v1364
    %v1563 = vunpack.c.l.b16 %v1365
    %v1564 = vunpack.c.l.b16 %v1366
    %v1565 = vunpack.c.l.b16 %v1367
    %v1566 = vunpack.c.l.b16 %v1368
    %v1567 = vunpack.c.l.b16 %v1369
    %v1568 = vunpack.c.l.b16 %v1370
    %v1569 = vunpack.c.l.b16 %v1371
    %v1570 = vunpack.c.l.b16 %v1372
    %v1571 = vunpack.c.l.b16 %v1373
    %v1572 = vunpack.c.l.b16 %v1374
    %v1573 = vunpack.c.l.b16 %v1375
    %v1574 = vunpack.c.l.b16 %v1376
    %v1575 = vunpack.c.l.b16 %v1377
    %v1576 = vunpack.c.l.b16 %v1378
    %v1577 = vunpack.c.l.b16 %v1379
    %v1578 = vunpack.c.l.b16 %v1380
    %v1579 = vunpack.c.l.b16 %v1381
    %v1580 = vunpack.c.l.b16 %v1382
    %v1581 = vunpack.c.l.b16 %v1383
    %v1582 = vunpack.c.l.b16 %v1384
    %v1583 = vunpack.c.l.b16 %v1385
    %v1584 = vunpack.c.l.b16 %v1386
    %v1585 = vunpack.c.l.b16 %v1387
    %v1586 = vunpack.c.l.b16 %v1388
    %v1587 = vunpack.c.l.b16 %v1389
    %v1588 = vunpack.c.l.b16 %v1390
    %v1589 = vunpack.c.l.b16 %v1391
    %v1590 = vunpack.c.l.b16 %v1392
    %v1591 = vunpack.c.l.b16 %v1393
    %v1592 = vunpack.c.l.b16 %v1394
    %v1593 = vunpack.c.l.b16 %v1395
    %v1594 = vunpack.c.l.b16 %v1396
    %v1595 = vunpack.c.l.b16 %v1397
    %v1596 = vunpack.c.l.b16 %v1398
    %v1597 = vunpack.c.l.b16 %v1399
    %v1598 = vunpack.c.l.b16 %v1400
    %v1599 = vunpack.c.l.b16 %v1401
    %v1600 = vunpack.c.l.b16 %v1402
    %v1601 = vunpack.c.l.b16 %v1403
    %v1602 = vunpack.c.l.b16 %v1404
    %v1603 = vunpack.c.l.b16 %v1405
    %v1604 = vunpack.c.l.b16 %v1406
    %v1605 = vunpack.c.l.b16 %v1407
    %v1606 = vunpack.c.l.b16 %v1408
    %v1607 = vunpack.c.l.b16 %v1409
    %v1608 = vunpack.c.l.b16 %v1410
    %v1609 = vunpack.c.l.b16 %v1411
    %v1610 = vunpack.c.l.b16 %v1412
    %v1611 = vunpack.c.l.b16 %v1413
    %v1612 = vunpack.c.l.b16 %v1414
    %v1613 = vunpack.c.l.b16 %v1415
    %v1614 = vunpack.c.l.b16 %v1416
    %v1615 = vunpack.c.l.b16 %v1417
    %v1616 = vunpack.c.l.b16 %v1418
    %v1617 = vunpack.c.l.b16 %v1419
    %v1618 = vunpack.c.l.b16 %v1420
    %v1619 = vunpack.c.l.b16 %v1421
    %v1620 = vunpack.c.l.b16 %v1422
    %v1621 = vunpack.c.l.b16 %v1423
    %v1622 = vunpack.c.l.b16 %v1424
    %v1623 = vunpack.c.l.b16 %v1425
    %v1624 = vunpack.c.l.b16 %v1426
    %v1625 = vunpack.c.l.b16 %v1427
    %v1626 = vunpack.c.l.b16 %v1428
    %v1627 = vunpack.c.l.b16 %v1429
    %v1628 = vunpack.c.l.b16 %v1430
    %v1629 = vunpack.c.l.b16 %v1431
    %v1630 = vunpack.c.l.b16 %v1432
    %v1631 = vunpack.c.l.b16 %v1433
    %v1632 = vunpack.c.l.b16 %v1434
    %v1633 = vunpack.c.l.b16 %v1435
    %v1634 = vunpack.c.l.b16 %v1436
    %v1635 = vunpack.c.l.b16 %v1437
    %v1636 = vunpack.c.l.b16 %v1438
    %v1637 = vunpack.c.l.b16 %v1439
    %v1638 = vunpack.c.l.b16 %v1440
    %v1639 = vunpack.c.l.b16 %v1441
    %v1640 = vunpack.c.l.b16 %v1442
    %v1641 = vunpack.c.l.b16 %v1443
    %v1642 = vunpack.c.l.b16 %v1444
    %v1643 = vpack.c.b16 %v1548, %v1547
    %v1644 = vpack.c.b16 %v1550, %v1549
    %v1645 = vpack.c.b16 %v1552, %v1551
    %v1646 = vpack.c.b16 %v1554, %v1553
    %v1647 = vpack.c.b16 %v1556, %v1555
    %v1648 = vpack.c.b16 %v1558, %v1557
    %v1649 = vpack.c.b16 %v1560, %v1559
    %v1650 = vpack.c.b16 %v1562, %v1561
    %v1651 = vpack.c.b16 %v1564, %v1563
    %v1652 = vpack.c.b16 %v1566, %v1565
    %v1653 = vpack.c.b16 %v1568, %v1567
    %v1654 = vpack.c.b16 %v1570, %v1569
    %v1655 = vpack.c.b16 %v1572, %v1571
    %v1656 = vpack.c.b16 %v1574, %v1573
    %v1657 = vpack.c.b16 %v1576, %v1575
    %v1658 = vpack.c.b16 %v1578, %v1577
    %v1659 = vpack.c.b16 %v1580, %v1579
    %v1660 = vpack.c.b16 %v1582, %v1581
    %v1661 = vpack.c.b16 %v1584, %v1583
    %v1662 = vpack.c.b16 %v1586, %v1585
    %v1663 = vpack.c.b16 %v1588, %v1587
    %v1664 = vpack.c.b16 %v1590, %v1589
    %v1665 = vpack.c.b16 %v1592, %v1591
    %v1666 = vpack.c.b16 %v1594, %v1593
    %v1667 = vpack.c.b16 %v1596, %v1595
    %v1668 = vpack.c.b16 %v1598, %v1597
    %v1669 = vpack.c.b16 %v1600, %v1599
    %v1670 = vpack.c.b16 %v1602, %v1601
    %v1671 = vpack.c.b16 %v1604, %v1603
    %v1672 = vpack.c.b16 %v1606, %v1605
    %v1673 = vpack.c.b16 %v1608, %v1607
    %v1674 = vpack.c.b16 %v1610, %v1609
    %v1675 = vpack.c.b16 %v1612, %v1611
    %v1676 = vpack.c.b16 %v1614, %v1613
    %v1677 = vpack.c.b16 %v1616, %v1615
    %v1678 = vpack.c.b16 %v1618, %v1617
    %v1679 = vpack.c.b16 %v1620, %v1619
    %v1680 = vpack.c.b16 %v1622, %v1621
    %v1681 = vpack.c.b16 %v1624, %v1623
    %v1682 = vpack.c.b16 %v1626, %v1625
    %v1683 = vpack.c.b16 %v1628, %v1627
    %v1684 = vpack.c.b16 %v1630, %v1629
    %v1685 = vpack.c.b16 %v1632, %v1631
    %v1686 = vpack.c.b16 %v1634, %v1633
    %v1687 = vpack.c.b16 %v1636, %v1635
    %v1688 = vpack.c.b16 %v1638, %v1637
    %v1689 = vpack.c.b16 %v1640, %v1639
    %v1690 = vpack.c.b16 %v1642, %v1641
    %1739 = vmatprep.subr.bf16.mxu0 0
    %1740 = vmatpush1.bf16.msra.mxu0 %v1650
    %1741 = vmatprep.subr.bf16.mxu0 0
    %1742 = vmatpush1.bf16.msra.mxu0 %v1649
    %1743 = vmatprep.subr.bf16.mxu0 0
    %1744 = vmatpush1.bf16.msra.mxu0 %v1648
    %1745 = vmatprep.subr.bf16.mxu0 0
    %1746 = vmatpush1.bf16.msra.mxu0 %v1647
    %1747 = vmatprep.subr.bf16.mxu0 0
    %1748 = vmatpush1.bf16.msra.mxu0 %v1646
    %1749 = vmatprep.subr.bf16.mxu0 0
    %1750 = vmatpush1.bf16.msra.mxu0 %v1645
    %1751 = vmatprep.subr.bf16.mxu0 0
    %1752 = vmatpush1.bf16.msra.mxu0 %v1644
    %1753 = vmatprep.subr.bf16.mxu0 0
    %1754 = vmatpush1.bf16.msra.mxu0 %v1643
    %1755 = vmatprep.subr.bf16.mxu0 0
    %1756 = vmatpush2.bf16.msra.mxu0 %v1658
    %1757 = vmatprep.subr.bf16.mxu0 0
    %1758 = vmatpush2.bf16.msra.mxu0 %v1657
    %1759 = vmatprep.subr.bf16.mxu0 0
    %1760 = vmatpush2.bf16.msra.mxu0 %v1656
    %1761 = vmatprep.subr.bf16.mxu0 0
    %1762 = vmatpush2.bf16.msra.mxu0 %v1655
    %1763 = vmatprep.subr.bf16.mxu0 0
    %1764 = vmatpush2.bf16.msra.mxu0 %v1654
    %1765 = vmatprep.subr.bf16.mxu0 0
    %1766 = vmatpush2.bf16.msra.mxu0 %v1653
    %1767 = vmatprep.subr.bf16.mxu0 0
    %1768 = vmatpush2.bf16.msra.mxu0 %v1652
    %1769 = vmatprep.subr.bf16.mxu0 0
    %1770 = vmatpush2.bf16.msra.mxu0 %v1651
    %1771 = vmatprep.mubr.bf16.mxu0 %v1344
    %1772 = vmatmul.mubr.bf16.gmra.mxu0 %v1343
    %v1773 = vpop.f32.mrf.mxu0
    %v1774 = vadd.f32 %v1449, %v1773
    %v1775 = vpop.f32.mrf.mxu0
    %v1776 = vpop.f32.mrf.mxu0
    %v1777 = vpop.f32.mrf.mxu0
    %1778 = vdwg.mxu0
    %1779 = vmatprep.subr.bf16.mxu0 0
    %1780 = vmatpush1.bf16.msra.mxu0 %v1666
    %1781 = vmatprep.subr.bf16.mxu0 0
    %1782 = vmatpush1.bf16.msra.mxu0 %v1665
    %1783 = vmatprep.subr.bf16.mxu0 0
    %1784 = vmatpush1.bf16.msra.mxu0 %v1664
    %1785 = vmatprep.subr.bf16.mxu0 0
    %1786 = vmatpush1.bf16.msra.mxu0 %v1663
    %1787 = vmatprep.subr.bf16.mxu0 0
    %1788 = vmatpush1.bf16.msra.mxu0 %v1662
    %1789 = vmatprep.subr.bf16.mxu0 0
    %1790 = vmatpush1.bf16.msra.mxu0 %v1661
    %1791 = vmatprep.subr.bf16.mxu0 0
    %1792 = vmatpush1.bf16.msra.mxu0 %v1660
    %1793 = vmatprep.subr.bf16.mxu0 0
    %1794 = vmatpush1.bf16.msra.mxu0 %v1659
    %1795 = vmatprep.subr.bf16.mxu0 0
    %1796 = vmatpush2.bf16.msra.mxu0 %v1674
    %1797 = vmatprep.subr.bf16.mxu0 0
    %1798 = vmatpush2.bf16.msra.mxu0 %v1673
    %1799 = vmatprep.subr.bf16.mxu0 0
    %1800 = vmatpush2.bf16.msra.mxu0 %v1672
    %1801 = vmatprep.subr.bf16.mxu0 0
    %1802 = vmatpush2.bf16.msra.mxu0 %v1671
    %1803 = vmatprep.subr.bf16.mxu0 0
    %1804 = vmatpush2.bf16.msra.mxu0 %v1670
    %1805 = vmatprep.subr.bf16.mxu0 0
    %1806 = vmatpush2.bf16.msra.mxu0 %v1669
    %1807 = vmatprep.subr.bf16.mxu0 0
    %1808 = vmatpush2.bf16.msra.mxu0 %v1668
    %1809 = vmatprep.subr.bf16.mxu0 0
    %1810 = vmatpush2.bf16.msra.mxu0 %v1667
    %1811 = vmatprep.mubr.bf16.mxu0 %v1346
    %1812 = vmatmul.mubr.bf16.gmra.mxu0 %v1345
    %v1813 = vpop.f32.mrf.mxu0
    %v1814 = vadd.f32 %v1774, %v1813
    %v1815 = vpop.f32.mrf.mxu0
    %v1816 = vpop.f32.mrf.mxu0
    %v1817 = vpop.f32.mrf.mxu0
    %1818 = vdwg.mxu0
    %1819 = vmatprep.subr.bf16.mxu0 0
    %1820 = vmatpush1.bf16.msra.mxu0 %v1682
    %1821 = vmatprep.subr.bf16.mxu0 0
    %1822 = vmatpush1.bf16.msra.mxu0 %v1681
    %1823 = vmatprep.subr.bf16.mxu0 0
    %1824 = vmatpush1.bf16.msra.mxu0 %v1680
    %1825 = vmatprep.subr.bf16.mxu0 0
    %1826 = vmatpush1.bf16.msra.mxu0 %v1679
    %1827 = vmatprep.subr.bf16.mxu0 0
    %1828 = vmatpush1.bf16.msra.mxu0 %v1678
    %1829 = vmatprep.subr.bf16.mxu0 0
    %1830 = vmatpush1.bf16.msra.mxu0 %v1677
    %1831 = vmatprep.subr.bf16.mxu0 0
    %1832 = vmatpush1.bf16.msra.mxu0 %v1676
    %1833 = vmatprep.subr.bf16.mxu0 0
    %1834 = vmatpush1.bf16.msra.mxu0 %v1675
    %1835 = vmatprep.subr.bf16.mxu0 0
    %1836 = vmatpush2.bf16.msra.mxu0 %v1690
    %1837 = vmatprep.subr.bf16.mxu0 0
    %1838 = vmatpush2.bf16.msra.mxu0 %v1689
    %1839 = vmatprep.subr.bf16.mxu0 0
    %1840 = vmatpush2.bf16.msra.mxu0 %v1688
    %1841 = vmatprep.subr.bf16.mxu0 0
    %1842 = vmatpush2.bf16.msra.mxu0 %v1687
    %1843 = vmatprep.subr.bf16.mxu0 0
    %1844 = vmatpush2.bf16.msra.mxu0 %v1686
    %1845 = vmatprep.subr.bf16.mxu0 0
    %1846 = vmatpush2.bf16.msra.mxu0 %v1685
    %1847 = vmatprep.subr.bf16.mxu0 0
    %1848 = vmatpush2.bf16.msra.mxu0 %v1684
    %1849 = vmatprep.subr.bf16.mxu0 0
    %1850 = vmatpush2.bf16.msra.mxu0 %v1683
    %1851 = vmatprep.mubr.bf16.mxu0 %v1348
    %1852 = vmatmul.mubr.bf16.gmra.mxu0 %v1347
    %v1853 = vpop.f32.mrf.mxu0
    %v1854 = vadd.f32 %v1814, %v1853
    %v1855 = vpop.f32.mrf.mxu0
    %v1856 = vpop.f32.mrf.mxu0
    %v1857 = vpop.f32.mrf.mxu0
    %1858 = vdwg.mxu0
    %vm1859 = vcmp.eq.f32.partialorder %v62, 0.0
    %vm1860 = vcmp.eq.f32.partialorder %v62, 1.0
    %v1861 = vsel %vm1860, 1, 0
    %1862 = vset.pattern.permute.xlu0 2
    %1863 = vperm.xlu0 %1862, %v1861
    %v1864 = vpop.permute.xlu0 %1863
    %vm1865 = vcmp.eq.s32.totalorder %v1864, 1
    %1867 = vrot.lane.b32.xlu0 %v1854, 126
    %v1868 = vpop.permute.xlu0 %1867
    %v1870 = vsel %vm1865, %v1854, %v1868
    %v1871 = vsel %vm1859, 1, 0
    %1872 = vset.pattern.permute.xlu0 2
    %1873 = vperm.xlu0 %1872, %v1871
    %v1874 = vpop.permute.xlu0 %1873
    %vm1875 = vcmp.eq.s32.totalorder %v1874, 1
    %1877 = vrot.lane.b32.xlu0 %v1870, 126
    %v1878 = vpop.permute.xlu0 %1877
    %v1880 = vsel %vm1875, %v1854, %v1878
    %v1881 = vtanh.pop %v1880
    %vm1882 = vcmask 15360
    %1883 = vst.msk [vmem:[%s8] sm:$0xff] %vm1882, %v1881
    // Predicated region
    $region42: #{tpu_custom_call.1} parent=1 // pred_check
      _
    $region43: #{tpu_custom_call.1} parent=1 // pred_check_branch
      %1885 = sbr.rel (0) target = $region45
    $region44: #{tpu_custom_call.1} parent=1 // pred_region
      _
    $region45: #{tpu_custom_call.1} parent=1 // pred_fallthru
      _
    // Predicated region
    $region46: #{tpu_custom_call.1} parent=1 // pred_check
      _
    $region47: #{tpu_custom_call.1} parent=1 // pred_check_branch
      %1887 = sbr.rel (0) target = $region49
    $region48: #{tpu_custom_call.1} parent=1 // pred_region
      _
    $region49: #{tpu_custom_call.1} parent=1 // pred_fallthru
      _
    %1888 = vsyncpa [#allocation3], 1
    %1889 = vsyncpa [#allocation5], 1

</llo_original>
